<compile_context>
chip_gen: v6e
topology: v6e:2x2x1
jax: 0.10.0
libtpu: 0.0.40
codegen_flags: <defaults>
</compile_context>

<pallas_src>
import jax
import jax.numpy as jnp
from jax import lax
from jax.experimental import pallas as pl
from jax.experimental.pallas import tpu as pltpu

EPS = 1e-8


def _glu_kernel(x_ref, wgu_ref, wd_ref, d_ref):
    x = x_ref[...].astype(jnp.float32)                      # (tb, In)
    H = wd_ref.shape[0]

    # rms_norm (the reference mean-centers, unbiased=False, eps=1e-8).
    # Exact sqrt division (not approx rsqrt) since the result feeds round().
    mean = jnp.mean(x, axis=-1, keepdims=True)
    xc = x - mean
    var = jnp.mean(xc * xc, axis=-1, keepdims=True)
    xn = xc / jnp.sqrt(var + EPS)

    # activation_quant as integer codes; per-row dequant applied AFTER the
    # matmul (the codes are exactly representable in bf16).
    amax = jnp.max(jnp.abs(xn), axis=-1, keepdims=True)
    s = 127.0 / amax
    q = jnp.clip(jnp.round(s * xn), -128.0, 127.0)          # exact integers

    # Fused gate|up ternary projection on the bf16 MXU path (exact, f32 acc):
    #   gu = (q @ [sign(W_g).T | sign(W_u).T]) * (amax / 127)
    gu = jnp.dot(q.astype(jnp.bfloat16), wgu_ref[...],
                 preferred_element_type=jnp.float32)        # (tb, 2H) f32
    gu = gu * (amax * (1.0 / 127.0))                        # == gu / s (~1 ulp)
    g_lin = gu[:, :H]                                       # 128-lane aligned
    u_lin = gu[:, H:]

    g_t = g_lin * jax.nn.sigmoid(g_lin)                     # SiLU
    p_t = g_t * u_lin                                       # (tb, H) f32

    # Down projection: p_t is arbitrary f32, so use an exact 3-way bf16 split
    # accumulated in f32 -> ~f32 accuracy on the fast bf16 MXU path.
    p0 = p_t.astype(jnp.bfloat16)
    r1 = p_t - p0.astype(jnp.float32)
    p1 = r1.astype(jnp.bfloat16)
    p2 = (r1 - p1.astype(jnp.float32)).astype(jnp.bfloat16)
    wd = wd_ref[...]                                        # (H, In) bf16
    d = (jnp.dot(p0, wd, preferred_element_type=jnp.float32)
         + jnp.dot(p1, wd, preferred_element_type=jnp.float32)
         + jnp.dot(p2, wd, preferred_element_type=jnp.float32))

    d_ref[...] = d.astype(d_ref.dtype)


def prepare_weights(W_g, W_u, W_d):
    """One-time weight preprocessing (outside the per-call hot path).

    W_g, W_u: (H, In);  W_d: (In, H)  -- the module's parameter layout.
    Returns  w_gu: (In, 2H) bf16 ternary,  w_d: (H, In) bf16 ternary.
    """
    w_gu = jnp.concatenate([jnp.sign(W_g).T, jnp.sign(W_u).T], axis=1)
    w_d = jnp.sign(W_d).T
    # {-1, 0, +1} is exact in bf16: halves weight HBM traffic, keeps zeros.
    return w_gu.astype(jnp.bfloat16), w_d.astype(jnp.bfloat16)


def _vmem_capacity_bytes():
    try:
        return int(pltpu.get_tpu_info().vmem_capacity_bytes)
    except Exception:
        return 64 * 1024 * 1024          # conservative: v7x per-TC VMEM


def matmul_free_glu(x, w_gu, w_d, *, block_b=None):
    """x: (B, In); w_gu: (In, 2H) bf16; w_d: (H, In) bf16. Returns (B, In)."""
    B, In = x.shape
    two_h = w_gu.shape[1]
    H = two_h // 2
    assert w_gu.shape == (In, 2 * H) and w_d.shape == (H, In)
    assert B % 8 == 0, "pad batch to a multiple of 8"
    assert In % 128 == 0 and H % 128 == 0, "pad features to the 128-lane width"

    vmem_cap = _vmem_capacity_bytes()
    usable = int(vmem_cap * 0.85)        # leave headroom for compiler scratch

    # Weights stay VMEM-resident (single-buffered via constant index maps).
    weight_bytes = (In * 2 * H + H * In) * 2                 # bf16 ternary
    # TODO(synk): if weight_bytes alone exceeds `usable` (e.g. In=H>=4096 on a
    # 64 MiB/TC v7x) add an H-tiling grid axis ("arbitrary", last) with a VMEM
    # f32 accumulator + pl.when init/finalize and stream interleaved
    # [g_tile | u_tile] weight column blocks (128-aligned) from HBM.
    assert weight_bytes <= usable, "weights too large to stay VMEM-resident"

    def tile_bytes(tb):
        io = 2 * 2 * (tb * In * 4)                 # x + out, double-buffered
        interm = tb * (2 * H) * 4 + 4 * tb * H * 4 + 3 * tb * In * 4
        return io + interm

    # Batch tile: large enough to fill the MXU (128-256 rows); auto-shrunk to
    # fit VMEM beside the resident weights; nb >= 2 when B allows (megacore).
    if block_b is None:
        block_b = 8
        for cand in range(8, min(256, B) + 1, 8):
            if B % cand == 0:
                block_b = cand
        if B // block_b < 2 and B >= 256 and (B // 2) % 8 == 0:
            block_b = B // 2
    while (block_b >= 16 and block_b % 16 == 0
           and weight_bytes + tile_bytes(block_b) > usable):
        block_b //= 2
    assert block_b % 8 == 0 and B % block_b == 0

    budget = weight_bytes + tile_bytes(block_b) + (8 << 20)
    vmem_limit = int(min(max(budget, 32 << 20), usable))

    nb = B // block_b
    flops = 10 * B * In * H                  # fused gate|up + bf16x3 down proj
    bytes_accessed = weight_bytes + 2 * B * In * 4

    return pl.pallas_call(
        _glu_kernel,
        out_shape=jax.ShapeDtypeStruct((B, In), x.dtype),
        grid=(nb,),
        in_specs=[
            pl.BlockSpec((block_b, In), lambda i: (i, 0)),        # x: walks batch
            pl.BlockSpec((In, 2 * H), lambda i: (0, 0),           # fused W_g|W_u
                         pipeline_mode=pl.Buffered(1)),           # single buffer
            pl.BlockSpec((H, In), lambda i: (0, 0),               # W_d
                         pipeline_mode=pl.Buffered(1)),
        ],
        out_specs=pl.BlockSpec((block_b, In), lambda i: (i, 0)),
        compiler_params=pltpu.CompilerParams(
            dimension_semantics=("parallel",),                    # megacore on v7x
            vmem_limit_bytes=vmem_limit,
        ),
        cost_estimate=pl.CostEstimate(
            flops=flops,
            transcendentals=B * H + B,
            bytes_accessed=bytes_accessed,
        ),
    )(x, w_gu, w_d)


def _reference(x, W_g, W_u, W_d, eps=EPS):
    """Pure-JAX mirror of the PyTorch forward (full f32 precision)."""
    hi = lax.Precision.HIGHEST
    mean = jnp.mean(x, axis=-1, keepdims=True)
    var = jnp.mean((x - mean) ** 2, axis=-1, keepdims=True)
    xn = (x - mean) / jnp.sqrt(var + eps)
    s = 127.0 / jnp.max(jnp.abs(xn), axis=-1, keepdims=True)
    xq = jnp.clip(jnp.round(s * xn), -128.0, 127.0) / s

    def mm_free(inp, w_t):
        pos = (w_t == 1).astype(jnp.float32)
        neg = (w_t == -1).astype(jnp.float32)
        return (jnp.dot(inp, pos, precision=hi)
                - jnp.dot(inp, neg, precision=hi))

    g_lin = mm_free(xq, jnp.sign(W_g).T)
    u_lin = mm_free(xq, jnp.sign(W_u).T)
    g_t = g_lin * jax.nn.sigmoid(g_lin)          # SiLU
    p_t = g_t * u_lin
    d_t = mm_free(p_t, jnp.sign(W_d).T)
    return d_t


if __name__ == "__main__":
    # Hardware-aligned shapes (batch multiple of 8, features multiples of 128)
    # small enough to run instantly but big enough that the batch tile picks
    # 128 rows and nb = 2 (exercises the MXU-filling + megacore path).
    B, input_size, hidden_size = 256, 128, 128

    key = jax.random.PRNGKey(0)
    k_x, k_g, k_u, k_d = jax.random.split(key, 4)
    x = jax.random.normal(k_x, (B, input_size), dtype=jnp.float32)
    W_g = jax.random.normal(k_g, (hidden_size, input_size), jnp.float32) * 0.01
    W_u = jax.random.normal(k_u, (hidden_size, input_size), jnp.float32) * 0.01
    W_d = jax.random.normal(k_d, (input_size, hidden_size), jnp.float32) * 0.01

    # One-time weight prep (ternarize + transpose + fuse + narrow to bf16).
    w_gu, w_d = prepare_weights(W_g, W_u, W_d)

    d_t = matmul_free_glu(x, w_gu, w_d)
    jax.block_until_ready(d_t)
    assert d_t.shape == (B, input_size)

    d_ref = _reference(x, W_g, W_u, W_d)
    max_err = float(jnp.max(jnp.abs(d_t - d_ref)))
    scale = float(jnp.max(jnp.abs(d_ref)))
    assert max_err <= 1e-4 * max(scale, 1.0), (max_err, scale)

    print("KERNEL_OK")
</pallas_src>

<mosaic_0001>
module attributes {stable_mosaic.version = 11 : i64} {
  func.func @_glu_kernel(%arg0: i32, %arg1: memref<128x128xf32, #tpu.memory_space<vmem>>, %arg2: memref<128x256xbf16, #tpu.memory_space<vmem>>, %arg3: memref<128x128xbf16, #tpu.memory_space<vmem>>, %arg4: memref<128x128xf32, #tpu.memory_space<vmem>>) attributes {dimension_semantics = [#tpu.dimension_semantics<parallel>], iteration_bounds = array<i64: 2>, scalar_prefetch = 0 : i64, scratch_operands = 0 : i64, tpu.core_type = #tpu.core_type<tc>, window_params = [{transform_indices = @transform_0, window_bounds = array<i64: 128, 128>}, {pipeline_mode = #tpu.pipeline_mode<synchronous>, transform_indices = @transform_1, window_bounds = array<i64: 128, 256>}, {pipeline_mode = #tpu.pipeline_mode<synchronous>, transform_indices = @transform_2, window_bounds = array<i64: 128, 128>}, {transform_indices = @transform_3, window_bounds = array<i64: 128, 128>}]} {
    %c0 = arith.constant 0 : index
    %c0_0 = arith.constant 0 : index
    %0 = vector.load %arg1[%c0, %c0_0] : memref<128x128xf32, #tpu.memory_space<vmem>>, vector<128x128xf32>
    %cst = arith.constant dense<0.000000e+00> : vector<128xf32>
    %1 = vector.multi_reduction <add>, %0, %cst [1] : vector<128x128xf32> to vector<128xf32>
    %2 = vector.shape_cast %1 : vector<128xf32> to vector<128x1xf32>
    %cst_1 = arith.constant 1.280000e+02 : f32
    %3 = vector.broadcast %cst_1 : f32 to vector<128x1xf32>
    %4 = arith.divf %2, %3 : vector<128x1xf32>
    %5 = vector.broadcast %4 : vector<128x1xf32> to vector<128x128xf32>
    %6 = arith.subf %0, %5 : vector<128x128xf32>
    %7 = arith.mulf %6, %6 : vector<128x128xf32>
    %cst_2 = arith.constant dense<0.000000e+00> : vector<128xf32>
    %8 = vector.multi_reduction <add>, %7, %cst_2 [1] : vector<128x128xf32> to vector<128xf32>
    %9 = vector.shape_cast %8 : vector<128xf32> to vector<128x1xf32>
    %cst_3 = arith.constant 1.280000e+02 : f32
    %10 = vector.broadcast %cst_3 : f32 to vector<128x1xf32>
    %11 = arith.divf %9, %10 : vector<128x1xf32>
    %cst_4 = arith.constant 9.99999993E-9 : f32
    %12 = vector.broadcast %cst_4 : f32 to vector<128x1xf32>
    %13 = arith.addf %11, %12 : vector<128x1xf32>
    %14 = math.sqrt %13 : vector<128x1xf32>
    %15 = vector.broadcast %14 : vector<128x1xf32> to vector<128x128xf32>
    %16 = arith.divf %6, %15 : vector<128x128xf32>
    %17 = math.absf %16 : vector<128x128xf32>
    %cst_5 = arith.constant dense<0xFF800000> : vector<128xf32>
    %18 = vector.multi_reduction <maximumf>, %17, %cst_5 [1] : vector<128x128xf32> to vector<128xf32>
    %19 = vector.shape_cast %18 : vector<128xf32> to vector<128x1xf32>
    %cst_6 = arith.constant 1.270000e+02 : f32
    %20 = vector.broadcast %cst_6 : f32 to vector<128x1xf32>
    %21 = arith.divf %20, %19 : vector<128x1xf32>
    %22 = vector.broadcast %21 : vector<128x1xf32> to vector<128x128xf32>
    %23 = arith.mulf %22, %16 : vector<128x128xf32>
    %24 = math.roundeven %23 : vector<128x128xf32>
    %cst_7 = arith.constant -1.280000e+02 : f32
    %cst_8 = arith.constant 1.270000e+02 : f32
    %25 = vector.broadcast %cst_7 : f32 to vector<128x128xf32>
    %26 = arith.maximumf %25, %24 : vector<128x128xf32>
    %27 = vector.broadcast %cst_8 : f32 to vector<128x128xf32>
    %28 = arith.minimumf %27, %26 : vector<128x128xf32>
    %29 = arith.truncf %28 : vector<128x128xf32> to vector<128x128xbf16>
    %c0_9 = arith.constant 0 : index
    %c0_10 = arith.constant 0 : index
    %30 = vector.load %arg2[%c0_9, %c0_10] : memref<128x256xbf16, #tpu.memory_space<vmem>>, vector<128x256xbf16>
    %cst_11 = arith.constant dense<0.000000e+00> : vector<128x256xf32>
    %31 = tpu.matmul %29, %30, %cst_11 {dimension_numbers = #tpu.dot_dimension_numbers<[1], [0], [0], [1], [0, 0, 1, 1], [], []>} : vector<128x128xbf16>, vector<128x256xbf16>, vector<128x256xf32> -> vector<128x256xf32>
    %cst_12 = arith.constant 0.00787401571 : f32
    %32 = vector.broadcast %cst_12 : f32 to vector<128x1xf32>
    %33 = arith.mulf %19, %32 : vector<128x1xf32>
    %34 = vector.broadcast %33 : vector<128x1xf32> to vector<128x256xf32>
    %35 = arith.mulf %31, %34 : vector<128x256xf32>
    %36 = vector.extract_strided_slice %35 {offsets = [0, 0], sizes = [128, 128], strides = [1, 1]} : vector<128x256xf32> to vector<128x128xf32>
    %37 = vector.extract_strided_slice %35 {offsets = [0, 128], sizes = [128, 128], strides = [1, 1]} : vector<128x256xf32> to vector<128x128xf32>
    %38 = arith.negf %36 : vector<128x128xf32>
    %39 = math.exp %38 : vector<128x128xf32>
    %cst_13 = arith.constant 1.000000e+00 : f32
    %40 = vector.broadcast %cst_13 : f32 to vector<128x128xf32>
    %41 = arith.addf %40, %39 : vector<128x128xf32>
    %42 = arith.divf %40, %41 : vector<128x128xf32>
    %43 = arith.mulf %36, %42 : vector<128x128xf32>
    %44 = arith.mulf %43, %37 : vector<128x128xf32>
    %45 = arith.truncf %44 : vector<128x128xf32> to vector<128x128xbf16>
    %46 = arith.extf %45 : vector<128x128xbf16> to vector<128x128xf32>
    %47 = arith.subf %44, %46 : vector<128x128xf32>
    %48 = arith.truncf %47 : vector<128x128xf32> to vector<128x128xbf16>
    %49 = arith.extf %48 : vector<128x128xbf16> to vector<128x128xf32>
    %50 = arith.subf %47, %49 : vector<128x128xf32>
    %51 = arith.truncf %50 : vector<128x128xf32> to vector<128x128xbf16>
    %c0_14 = arith.constant 0 : index
    %c0_15 = arith.constant 0 : index
    %52 = vector.load %arg3[%c0_14, %c0_15] : memref<128x128xbf16, #tpu.memory_space<vmem>>, vector<128x128xbf16>
    %cst_16 = arith.constant dense<0.000000e+00> : vector<128x128xf32>
    %53 = tpu.matmul %45, %52, %cst_16 {dimension_numbers = #tpu.dot_dimension_numbers<[1], [0], [0], [1], [0, 0, 1, 1], [], []>} : vector<128x128xbf16>, vector<128x128xbf16>, vector<128x128xf32> -> vector<128x128xf32>
    %cst_17 = arith.constant dense<0.000000e+00> : vector<128x128xf32>
    %54 = tpu.matmul %48, %52, %cst_17 {dimension_numbers = #tpu.dot_dimension_numbers<[1], [0], [0], [1], [0, 0, 1, 1], [], []>} : vector<128x128xbf16>, vector<128x128xbf16>, vector<128x128xf32> -> vector<128x128xf32>
    %55 = arith.addf %53, %54 : vector<128x128xf32>
    %cst_18 = arith.constant dense<0.000000e+00> : vector<128x128xf32>
    %56 = tpu.matmul %51, %52, %cst_18 {dimension_numbers = #tpu.dot_dimension_numbers<[1], [0], [0], [1], [0, 0, 1, 1], [], []>} : vector<128x128xbf16>, vector<128x128xbf16>, vector<128x128xf32> -> vector<128x128xf32>
    %57 = arith.addf %55, %56 : vector<128x128xf32>
    %c0_19 = arith.constant 0 : index
    %c0_20 = arith.constant 0 : index
    %58 = vector.load %arg4[%c0_19, %c0_20] : memref<128x128xf32, #tpu.memory_space<vmem>>, vector<128x128xf32>
    tpu.vector_store %arg4[%c0_19, %c0_20], %57 {strides = array<i32>} : memref<128x128xf32, #tpu.memory_space<vmem>>, vector<128x128xf32>,
    return
  }
  func.func @transform_0(%arg0: i32) -> (i32, i32) {
    %c0_i32 = arith.constant 0 : i32
    %c0_i32_0 = arith.constant 0 : i32
    return %arg0, %c0_i32 : i32, i32
  }
  func.func @transform_1(%arg0: i32) -> (i32, i32) {
    %c0_i32 = arith.constant 0 : i32
    %c0_i32_0 = arith.constant 0 : i32
    %c0_i32_1 = arith.constant 0 : i32
    return %c0_i32, %c0_i32_0 : i32, i32
  }
  func.func @transform_2(%arg0: i32) -> (i32, i32) {
    %c0_i32 = arith.constant 0 : i32
    %c0_i32_0 = arith.constant 0 : i32
    %c0_i32_1 = arith.constant 0 : i32
    return %c0_i32, %c0_i32_0 : i32, i32
  }
  func.func @transform_3(%arg0: i32) -> (i32, i32) {
    %c0_i32 = arith.constant 0 : i32
    %c0_i32_0 = arith.constant 0 : i32
    return %arg0, %c0_i32 : i32, i32
  }
}

</mosaic_0001>

<llo_original>
// kernel: tpu_custom_call.1
$region0: #{tpu_custom_call.1}
  #allocation0 [shape = 'u32[]', space=smem, size = 0x4, offset = 0x4, fixed_abs, tag = 'smem constant byte address 0x4 - core index']
  #allocation1 [shape = 'u32[144,128]{1,0:T(1,128)}', space=vmem, size = 0x12000, scoped, tag = 'internal scratch']
  %s0 = inlined_call_operand.hbm [shape: f32[256,128], index: 0, kind: input, shape index: {}]
  %s1 = inlined_call_operand.hbm [shape: bf16[128,256], index: 1, kind: input, shape index: {}]
  %s2 = inlined_call_operand.hbm [shape: bf16[128,128], index: 2, kind: input, shape index: {}]
  %s3 = inlined_call_operand.hbm [shape: f32[256,128], index: 3, kind: output, shape index: {}]
  %s4 = sld [smem:[#allocation0]]
  $region57: #{tpu_custom_call.1} parent=0
    _
  %s6 = ssub.s32 1, %s4
  %s7 = scalar_select 0, %s6, %s4
  $region1: #{tpu_custom_call.1} parent=0
    #allocation2 [shape = 'u8[131072]{0}', space=vmem, size = 0x20000, scoped, tag = 'input window, operand 0']
    #allocation3 [shape = 's32[2]{0}', space=sflag, size = 0x8, scoped, tag = 'scoped memory for tpu_custom_call.1']
    #allocation4 [shape = 's32[2]{0}', space=sflag, size = 0x8, scoped, tag = 'scoped memory for tpu_custom_call.1']
    #allocation5 [shape = 'u8[65536]{0}', space=vmem, size = 0x10000, scoped, tag = 'input window, operand 1, single buffered']
    #allocation6 [shape = 's32[1]{0}', space=sflag, size = 0x4, scoped, tag = 'scoped memory for tpu_custom_call.1']
    #allocation7 [shape = 'u8[32768]{0}', space=vmem, size = 0x8000, scoped, tag = 'input window, operand 2, single buffered']
    #allocation8 [shape = 'u8[131072]{0}', space=vmem, size = 0x20000, scoped, tag = 'output window, operand 0']
    %8 = vsyncpa [#allocation3], 0
    %s9 = scalar_lea.sflag [#allocation3], 1
    %10 = vsyncpa %s9, 0
    %11 = vsyncpa [#allocation6], 0
    %12 = vsyncpa [#allocation4], 0
    %s13 = scalar_lea.sflag [#allocation4], 1
    %14 = vsyncpa %s13, 0
    loop: start=0, step=1, limit=4
    $region2: #{tpu_custom_call.1} parent=1 // loop_pre_header
      _
    $region3: #{tpu_custom_call.1} parent=1 // loop_header
      %s16 = sphi 0, %s20
      %p17 = scmp.ge.s32.totalorder %s16, 4
      %s26 = sphi 0, %s28
      %s29 = sphi 0, %s26
      %s30 = sphi 0, %s29
      %s46 = sphi 0, %s30
      %s50 = sphi 0, %s50
      %s52 = sphi 0, %s50
      %s53 = sphi 0, %s52
      %s67 = sphi 0, %s53
      %s71 = sphi 0, %s71
      %s73 = sphi 0, %s71
      %s74 = sphi 0, %s73
      %s88 = sphi 0, %s74
      %s94 = sphi 0, %s96
      %s97 = sphi 0, %s94
      %s98 = sphi 0, %s97
      %s114 = sphi 0, %s98
    $region4: #{tpu_custom_call.1} parent=1 // loop_header_branch
      %19 = sbr.rel (%p17) target = $region8
    $region5: #{tpu_custom_call.1} parent=1 // loop_body
      %s21 = ssub.s32 %s16, 1
      %s22 = ssub.s32 %s16, 2
      %s23 = sadd.s32 %s16, 1
      %s24 = ssub.s32 %s16, %s23
      %p25 = scmp.eq.s32.totalorder %s24, 0
      %s27 = sadd.s32 %s26, 1
      %s28 = scalar_select %p25, %s26, %s27
      %p31 = pneg %p25
      %p32 = scmp.eq.s32.totalorder %s16, 1
      %p33 = por %p31, %p32
      %p34 = scmp.ne.s32.totalorder %s26, %s29
      %p35 = scmp.eq.s32.totalorder %s16, 0
      %p36 = por %p34, %p35
      %p37 = scmp.ne.s32.totalorder %s26, %s29
      %p38 = scmp.eq.s32.totalorder %s21, 1
      %p39 = por %p37, %p38
      %p40 = scmp.ne.s32.totalorder %s29, %s30
      %p41 = scmp.eq.s32.totalorder %s21, 0
      %p42 = por %p40, %p41
      %p43 = scmp.ne.s32.totalorder %s29, %s30
      %p44 = scmp.eq.s32.totalorder %s22, 1
      %p45 = por %p43, %p44
      %p47 = scmp.ne.s32.totalorder %s30, %s46
      %p48 = scmp.eq.s32.totalorder %s22, 0
      %p49 = por %p47, %p48
      %s51 = sadd.s32 %s50, 1
      %p54 = scmp.eq.s32.totalorder %s16, 1
      %p55 = scmp.ne.s32.totalorder %s50, %s52
      %p56 = scmp.eq.s32.totalorder %s16, 0
      %p57 = por %p55, %p56
      %p58 = scmp.ne.s32.totalorder %s50, %s52
      %p59 = scmp.eq.s32.totalorder %s21, 1
      %p60 = por %p58, %p59
      %p61 = scmp.ne.s32.totalorder %s52, %s53
      %p62 = scmp.eq.s32.totalorder %s21, 0
      %p63 = por %p61, %p62
      %p64 = scmp.ne.s32.totalorder %s52, %s53
      %p65 = scmp.eq.s32.totalorder %s22, 1
      %p66 = por %p64, %p65
      %p68 = scmp.ne.s32.totalorder %s53, %s67
      %p69 = scmp.eq.s32.totalorder %s22, 0
      %p70 = por %p68, %p69
      %s72 = sadd.s32 %s71, 1
      %p75 = scmp.eq.s32.totalorder %s16, 1
      %p76 = scmp.ne.s32.totalorder %s71, %s73
      %p77 = scmp.eq.s32.totalorder %s16, 0
      %p78 = por %p76, %p77
      %p79 = scmp.ne.s32.totalorder %s71, %s73
      %p80 = scmp.eq.s32.totalorder %s21, 1
      %p81 = por %p79, %p80
      %p82 = scmp.ne.s32.totalorder %s73, %s74
      %p83 = scmp.eq.s32.totalorder %s21, 0
      %p84 = por %p82, %p83
      %p85 = scmp.ne.s32.totalorder %s73, %s74
      %p86 = scmp.eq.s32.totalorder %s22, 1
      %p87 = por %p85, %p86
      %p89 = scmp.ne.s32.totalorder %s74, %s88
      %p90 = scmp.eq.s32.totalorder %s22, 0
      %p91 = por %p89, %p90
      %s92 = ssub.s32 %s16, %s23
      %p93 = scmp.eq.s32.totalorder %s92, 0
      %s95 = sadd.s32 %s94, 1
      %s96 = scalar_select %p93, %s94, %s95
      %p99 = pneg %p93
      %p100 = scmp.eq.s32.totalorder %s16, 1
      %p101 = por %p99, %p100
      %p102 = scmp.ne.s32.totalorder %s94, %s97
      %p103 = scmp.eq.s32.totalorder %s16, 0
      %p104 = por %p102, %p103
      %p105 = scmp.ne.s32.totalorder %s94, %s97
      %p106 = scmp.eq.s32.totalorder %s21, 1
      %p107 = por %p105, %p106
      %p108 = scmp.ne.s32.totalorder %s97, %s98
      %p109 = scmp.eq.s32.totalorder %s21, 0
      %p110 = por %p108, %p109
      %p111 = scmp.ne.s32.totalorder %s97, %s98
      %p112 = scmp.eq.s32.totalorder %s22, 1
      %p113 = por %p111, %p112
      %p115 = scmp.ne.s32.totalorder %s98, %s114
      %p116 = scmp.eq.s32.totalorder %s22, 0
      %p117 = por %p115, %p116
      %p118 = scmp.le.s32.totalorder 1, %s16
      %p119 = scmp.lt.s32.totalorder %s16, 3
      %p120 = pnand %p118, %p119
      %p121 = pneg %p120
      // Predicated region
      $region9: #{tpu_custom_call.1} parent=5 // pred_check
        _
      $region10: #{tpu_custom_call.1} parent=5 // pred_check_branch
        %123 = sbr.rel (%p120) target = $region12
      $region11: #{tpu_custom_call.1} parent=5 // pred_region
        %s124 = ssub.s32 %s16, 1
        // Predicated region
        $region13: #{tpu_custom_call.1} parent=11 // pred_check
          %p125 = pneg %p63
        $region14: #{tpu_custom_call.1} parent=11 // pred_check_branch
          %127 = sbr.rel (%p125) target = $region16
        $region15: #{tpu_custom_call.1} parent=11 // pred_region
          %s129 = ssub.s32 2048, 2048
          %130 = vsyncadd [#allocation6], %s129
          %s131 = sshll.u32 [#allocation5], 4
          %s132 = int_to_ptr.vmem [resolvable:$true] %s131
          %137 = dma.hbm_to_vmem [thread:$0]  %s1, 2048, %s132, [#allocation6], 128, 128, 8
        $region16: #{tpu_custom_call.1} parent=11 // pred_fallthru
          _
        // Predicated region
        $region17: #{tpu_custom_call.1} parent=11 // pred_check
          %p138 = pneg %p84
        $region18: #{tpu_custom_call.1} parent=11 // pred_check_branch
          %140 = sbr.rel (%p138) target = $region20
        $region19: #{tpu_custom_call.1} parent=11 // pred_region
          %s142 = ssub.s32 1024, 1024
          %143 = vsyncadd [#allocation6], %s142
          %s144 = sshll.u32 [#allocation7], 4
          %s145 = int_to_ptr.vmem [resolvable:$true] %s144
          %150 = dma.hbm_to_vmem [thread:$0]  %s2, 1024, %s145, [#allocation6], 64, 64, 4
        $region20: #{tpu_custom_call.1} parent=11 // pred_fallthru
          _
      $region12: #{tpu_custom_call.1} parent=5 // pred_fallthru
        _
      %p151 = scmp.lt.s32.totalorder %s16, 2
      // Predicated region
      $region21: #{tpu_custom_call.1} parent=5 // pred_check
        %p152 = pneg %p151
      $region22: #{tpu_custom_call.1} parent=5 // pred_check_branch
        %154 = sbr.rel (%p152) target = $region24
      $region23: #{tpu_custom_call.1} parent=5 // pred_region
        // Predicated region
        $region25: #{tpu_custom_call.1} parent=23 // pred_check
          %p155 = pneg %p36
        $region26: #{tpu_custom_call.1} parent=23 // pred_check_branch
          %157 = sbr.rel (%p155) target = $region28
        $region27: #{tpu_custom_call.1} parent=23 // pred_region
          %s158 = sand.u32 %s26, 1
          %s159 = scalar_lea.sflag [#allocation3], %s158
          %s160 = sand.u32 %s26, 1
          %s161 = smul.addr %s160, 128
          %s162 = scalar_lea.vmem [#allocation2], %s161
          %s163 = smul.u32 16, %s16
          %s165 = ssub.s32 2048, 2048
          %166 = vsyncadd %s159, %s165
          %s167 = smul.addr %s163, 128
          %s168 = scalar_lea.hbm %s0, %s167
          %s169 = sshll.u32 %s162, 4
          %s170 = int_to_ptr.vmem [resolvable:$true] %s169
          %175 = dma.hbm_to_vmem [thread:$0]  %s168, 2048, %s170, %s159, 128, 128, 8
        $region28: #{tpu_custom_call.1} parent=23 // pred_fallthru
          _
      $region24: #{tpu_custom_call.1} parent=5 // pred_fallthru
        _
      %p176 = scmp.le.s32.totalorder 1, %s16
      %p177 = scmp.lt.s32.totalorder %s16, 3
      %p178 = pnand %p176, %p177
      %p179 = pneg %p178
      // Predicated region
      $region29: #{tpu_custom_call.1} parent=5 // pred_check
        _
      $region30: #{tpu_custom_call.1} parent=5 // pred_check_branch
        %181 = sbr.rel (%p178) target = $region32
      $region31: #{tpu_custom_call.1} parent=5 // pred_region
        %s182 = ssub.s32 %s16, 1
        %s183 = sand.u32 %s29, 1
        %s184 = scalar_lea.sflag [#allocation3], %s183
        %s185 = sand.u32 %s29, 1
        %s186 = smul.addr %s185, 128
        %s187 = scalar_lea.vmem [#allocation2], %s186
        // Predicated region
        $region33: #{tpu_custom_call.1} parent=31 // pred_check
          %p188 = pneg %p42
        $region34: #{tpu_custom_call.1} parent=31 // pred_check_branch
          %190 = sbr.rel (%p188) target = $region36
        $region35: #{tpu_custom_call.1} parent=31 // pred_region
          %191 = dma.done %s184, 2048
        $region36: #{tpu_custom_call.1} parent=31 // pred_fallthru
          _
        // Predicated region
        $region37: #{tpu_custom_call.1} parent=31 // pred_check
          %p192 = pneg %p63
        $region38: #{tpu_custom_call.1} parent=31 // pred_check_branch
          %194 = sbr.rel (%p192) target = $region40
        $region39: #{tpu_custom_call.1} parent=31 // pred_region
          %195 = dma.done [#allocation6], 2048
        $region40: #{tpu_custom_call.1} parent=31 // pred_fallthru
          _
        // Predicated region
        $region41: #{tpu_custom_call.1} parent=31 // pred_check
          %p196 = pneg %p84
        $region42: #{tpu_custom_call.1} parent=31 // pred_check_branch
          %198 = sbr.rel (%p196) target = $region44
        $region43: #{tpu_custom_call.1} parent=31 // pred_region
          %199 = dma.done [#allocation6], 1024
        $region44: #{tpu_custom_call.1} parent=31 // pred_fallthru
          _
        %s200 = sand.u32 %s29, 1
        %s201 = scalar_lea.sflag [#allocation3], %s200
        %s202 = sand.u32 %s29, 1
        %s203 = smul.addr %s202, 128
        %s204 = scalar_lea.vmem [#allocation2], %s203
        %p205 = pneg %p42
        %p206 = pneg %p39
        %p207 = pneg %p63
        %p208 = pneg %p60
        %p209 = pneg %p84
        %p210 = pneg %p81
        %p211 = pneg %p110
        %p212 = pneg %p107
        %s213 = sand.u32 %s97, 1
        %s214 = scalar_lea.sflag [#allocation4], %s213
        %s215 = sand.u32 %s97, 1
        %s216 = smul.addr %s215, 128
        %s217 = scalar_lea.vmem [#allocation8], %s216
        %s218 = smul.u32 16, %s21
        %s219 = smul.u32 16, %s21
        %v221 = vld [vmem:[%s187] sm:$0xff]
        %v222 = vld [vmem:[%s187 + $0x8] sm:$0xff]
        %v223 = vld [vmem:[%s187 + $0x10] sm:$0xff]
        %v224 = vld [vmem:[%s187 + $0x18] sm:$0xff]
        %v225 = vld [vmem:[%s187 + $0x20] sm:$0xff]
        %v226 = vld [vmem:[%s187 + $0x28] sm:$0xff]
        %v227 = vld [vmem:[%s187 + $0x30] sm:$0xff]
        %v228 = vld [vmem:[%s187 + $0x38] sm:$0xff]
        %v229 = vld [vmem:[%s187 + $0x40] sm:$0xff]
        %v230 = vld [vmem:[%s187 + $0x48] sm:$0xff]
        %v231 = vld [vmem:[%s187 + $0x50] sm:$0xff]
        %v232 = vld [vmem:[%s187 + $0x58] sm:$0xff]
        %v233 = vld [vmem:[%s187 + $0x60] sm:$0xff]
        %v234 = vld [vmem:[%s187 + $0x68] sm:$0xff]
        %v235 = vld [vmem:[%s187 + $0x70] sm:$0xff]
        %v236 = vld [vmem:[%s187 + $0x78] sm:$0xff]
        %237 = vadd.xlane.f32.xlu0 %v221
        %v238 = vpop.xlane.xlu0 %237
        %239 = vadd.xlane.f32.xlu0 %v222
        %v240 = vpop.xlane.xlu0 %239
        %241 = vadd.xlane.f32.xlu0 %v223
        %v242 = vpop.xlane.xlu0 %241
        %243 = vadd.xlane.f32.xlu0 %v224
        %v244 = vpop.xlane.xlu0 %243
        %245 = vadd.xlane.f32.xlu0 %v225
        %v246 = vpop.xlane.xlu0 %245
        %247 = vadd.xlane.f32.xlu0 %v226
        %v248 = vpop.xlane.xlu0 %247
        %249 = vadd.xlane.f32.xlu0 %v227
        %v250 = vpop.xlane.xlu0 %249
        %251 = vadd.xlane.f32.xlu0 %v228
        %v252 = vpop.xlane.xlu0 %251
        %253 = vadd.xlane.f32.xlu0 %v229
        %v254 = vpop.xlane.xlu0 %253
        %255 = vadd.xlane.f32.xlu0 %v230
        %v256 = vpop.xlane.xlu0 %255
        %257 = vadd.xlane.f32.xlu0 %v231
        %v258 = vpop.xlane.xlu0 %257
        %259 = vadd.xlane.f32.xlu0 %v232
        %v260 = vpop.xlane.xlu0 %259
        %261 = vadd.xlane.f32.xlu0 %v233
        %v262 = vpop.xlane.xlu0 %261
        %263 = vadd.xlane.f32.xlu0 %v234
        %v264 = vpop.xlane.xlu0 %263
        %265 = vadd.xlane.f32.xlu0 %v235
        %v266 = vpop.xlane.xlu0 %265
        %267 = vadd.xlane.f32.xlu0 %v236
        %v268 = vpop.xlane.xlu0 %267
        %v269 = vrcp.pop 128.0
        %v270 = vmul.f32 %v238, %v269
        %v271 = vmul.f32 %v240, %v269
        %v272 = vmul.f32 %v242, %v269
        %v273 = vmul.f32 %v244, %v269
        %v274 = vmul.f32 %v246, %v269
        %v275 = vmul.f32 %v248, %v269
        %v276 = vmul.f32 %v250, %v269
        %v277 = vmul.f32 %v252, %v269
        %v278 = vmul.f32 %v254, %v269
        %v279 = vmul.f32 %v256, %v269
        %v280 = vmul.f32 %v258, %v269
        %v281 = vmul.f32 %v260, %v269
        %v282 = vmul.f32 %v262, %v269
        %v283 = vmul.f32 %v264, %v269
        %v284 = vmul.f32 %v266, %v269
        %v285 = vmul.f32 %v268, %v269
        %v286 = vsub.f32 %v221, %v270
        %v287 = vsub.f32 %v222, %v271
        %v288 = vsub.f32 %v223, %v272
        %v289 = vsub.f32 %v224, %v273
        %v290 = vsub.f32 %v225, %v274
        %v291 = vsub.f32 %v226, %v275
        %v292 = vsub.f32 %v227, %v276
        %v293 = vsub.f32 %v228, %v277
        %v294 = vsub.f32 %v229, %v278
        %v295 = vsub.f32 %v230, %v279
        %v296 = vsub.f32 %v231, %v280
        %v297 = vsub.f32 %v232, %v281
        %v298 = vsub.f32 %v233, %v282
        %v299 = vsub.f32 %v234, %v283
        %v300 = vsub.f32 %v235, %v284
        %v301 = vsub.f32 %v236, %v285
        %v302 = vmul.f32 %v286, %v286
        %v303 = vmul.f32 %v287, %v287
        %v304 = vmul.f32 %v288, %v288
        %v305 = vmul.f32 %v289, %v289
        %v306 = vmul.f32 %v290, %v290
        %v307 = vmul.f32 %v291, %v291
        %v308 = vmul.f32 %v292, %v292
        %v309 = vmul.f32 %v293, %v293
        %v310 = vmul.f32 %v294, %v294
        %v311 = vmul.f32 %v295, %v295
        %v312 = vmul.f32 %v296, %v296
        %v313 = vmul.f32 %v297, %v297
        %v314 = vmul.f32 %v298, %v298
        %v315 = vmul.f32 %v299, %v299
        %v316 = vmul.f32 %v300, %v300
        %v317 = vmul.f32 %v301, %v301
        %318 = vadd.xlane.f32.xlu0 %v302
        %v319 = vpop.xlane.xlu0 %318
        %320 = vadd.xlane.f32.xlu0 %v303
        %v321 = vpop.xlane.xlu0 %320
        %322 = vadd.xlane.f32.xlu0 %v304
        %v323 = vpop.xlane.xlu0 %322
        %324 = vadd.xlane.f32.xlu0 %v305
        %v325 = vpop.xlane.xlu0 %324
        %326 = vadd.xlane.f32.xlu0 %v306
        %v327 = vpop.xlane.xlu0 %326
        %328 = vadd.xlane.f32.xlu0 %v307
        %v329 = vpop.xlane.xlu0 %328
        %330 = vadd.xlane.f32.xlu0 %v308
        %v331 = vpop.xlane.xlu0 %330
        %332 = vadd.xlane.f32.xlu0 %v309
        %v333 = vpop.xlane.xlu0 %332
        %334 = vadd.xlane.f32.xlu0 %v310
        %v335 = vpop.xlane.xlu0 %334
        %336 = vadd.xlane.f32.xlu0 %v311
        %v337 = vpop.xlane.xlu0 %336
        %338 = vadd.xlane.f32.xlu0 %v312
        %v339 = vpop.xlane.xlu0 %338
        %340 = vadd.xlane.f32.xlu0 %v313
        %v341 = vpop.xlane.xlu0 %340
        %342 = vadd.xlane.f32.xlu0 %v314
        %v343 = vpop.xlane.xlu0 %342
        %344 = vadd.xlane.f32.xlu0 %v315
        %v345 = vpop.xlane.xlu0 %344
        %346 = vadd.xlane.f32.xlu0 %v316
        %v347 = vpop.xlane.xlu0 %346
        %348 = vadd.xlane.f32.xlu0 %v317
        %v349 = vpop.xlane.xlu0 %348
        %v350 = vmul.f32 %v319, %v269
        %v351 = vmul.f32 %v321, %v269
        %v352 = vmul.f32 %v323, %v269
        %v353 = vmul.f32 %v325, %v269
        %v354 = vmul.f32 %v327, %v269
        %v355 = vmul.f32 %v329, %v269
        %v356 = vmul.f32 %v331, %v269
        %v357 = vmul.f32 %v333, %v269
        %v358 = vmul.f32 %v335, %v269
        %v359 = vmul.f32 %v337, %v269
        %v360 = vmul.f32 %v339, %v269
        %v361 = vmul.f32 %v341, %v269
        %v362 = vmul.f32 %v343, %v269
        %v363 = vmul.f32 %v345, %v269
        %v364 = vmul.f32 %v347, %v269
        %v365 = vmul.f32 %v349, %v269
        %v366 = vadd.f32 %v350, 1e-08
        %v367 = vadd.f32 %v351, 1e-08
        %v368 = vadd.f32 %v352, 1e-08
        %v369 = vadd.f32 %v353, 1e-08
        %v370 = vadd.f32 %v354, 1e-08
        %v371 = vadd.f32 %v355, 1e-08
        %v372 = vadd.f32 %v356, 1e-08
        %v373 = vadd.f32 %v357, 1e-08
        %v374 = vadd.f32 %v358, 1e-08
        %v375 = vadd.f32 %v359, 1e-08
        %v376 = vadd.f32 %v360, 1e-08
        %v377 = vadd.f32 %v361, 1e-08
        %v378 = vadd.f32 %v362, 1e-08
        %v379 = vadd.f32 %v363, 1e-08
        %v380 = vadd.f32 %v364, 1e-08
        %v381 = vadd.f32 %v365, 1e-08
        %v382 = vrsqrt.pop %v366
        %v383 = vmul.f32 %v366, %v382
        %vm384 = vcmp.eq.f32.partialorder %v366, inf
        %v385 = vsel %vm384, %v366, %v383
        %vm386 = vcmp.eq.f32.partialorder %v366, 0.0
        %v387 = vand.u32 %v366, 2147483648
        %v388 = vsel %vm386, %v387, %v385
        %v389 = vrsqrt.pop %v367
        %v390 = vmul.f32 %v367, %v389
        %vm391 = vcmp.eq.f32.partialorder %v367, inf
        %v392 = vsel %vm391, %v367, %v390
        %vm393 = vcmp.eq.f32.partialorder %v367, 0.0
        %v394 = vand.u32 %v367, 2147483648
        %v395 = vsel %vm393, %v394, %v392
        %v396 = vrsqrt.pop %v368
        %v397 = vmul.f32 %v368, %v396
        %vm398 = vcmp.eq.f32.partialorder %v368, inf
        %v399 = vsel %vm398, %v368, %v397
        %vm400 = vcmp.eq.f32.partialorder %v368, 0.0
        %v401 = vand.u32 %v368, 2147483648
        %v402 = vsel %vm400, %v401, %v399
        %v403 = vrsqrt.pop %v369
        %v404 = vmul.f32 %v369, %v403
        %vm405 = vcmp.eq.f32.partialorder %v369, inf
        %v406 = vsel %vm405, %v369, %v404
        %vm407 = vcmp.eq.f32.partialorder %v369, 0.0
        %v408 = vand.u32 %v369, 2147483648
        %v409 = vsel %vm407, %v408, %v406
        %v410 = vrsqrt.pop %v370
        %v411 = vmul.f32 %v370, %v410
        %vm412 = vcmp.eq.f32.partialorder %v370, inf
        %v413 = vsel %vm412, %v370, %v411
        %vm414 = vcmp.eq.f32.partialorder %v370, 0.0
        %v415 = vand.u32 %v370, 2147483648
        %v416 = vsel %vm414, %v415, %v413
        %v417 = vrsqrt.pop %v371
        %v418 = vmul.f32 %v371, %v417
        %vm419 = vcmp.eq.f32.partialorder %v371, inf
        %v420 = vsel %vm419, %v371, %v418
        %vm421 = vcmp.eq.f32.partialorder %v371, 0.0
        %v422 = vand.u32 %v371, 2147483648
        %v423 = vsel %vm421, %v422, %v420
        %v424 = vrsqrt.pop %v372
        %v425 = vmul.f32 %v372, %v424
        %vm426 = vcmp.eq.f32.partialorder %v372, inf
        %v427 = vsel %vm426, %v372, %v425
        %vm428 = vcmp.eq.f32.partialorder %v372, 0.0
        %v429 = vand.u32 %v372, 2147483648
        %v430 = vsel %vm428, %v429, %v427
        %v431 = vrsqrt.pop %v373
        %v432 = vmul.f32 %v373, %v431
        %vm433 = vcmp.eq.f32.partialorder %v373, inf
        %v434 = vsel %vm433, %v373, %v432
        %vm435 = vcmp.eq.f32.partialorder %v373, 0.0
        %v436 = vand.u32 %v373, 2147483648
        %v437 = vsel %vm435, %v436, %v434
        %v438 = vrsqrt.pop %v374
        %v439 = vmul.f32 %v374, %v438
        %vm440 = vcmp.eq.f32.partialorder %v374, inf
        %v441 = vsel %vm440, %v374, %v439
        %vm442 = vcmp.eq.f32.partialorder %v374, 0.0
        %v443 = vand.u32 %v374, 2147483648
        %v444 = vsel %vm442, %v443, %v441
        %v445 = vrsqrt.pop %v375
        %v446 = vmul.f32 %v375, %v445
        %vm447 = vcmp.eq.f32.partialorder %v375, inf
        %v448 = vsel %vm447, %v375, %v446
        %vm449 = vcmp.eq.f32.partialorder %v375, 0.0
        %v450 = vand.u32 %v375, 2147483648
        %v451 = vsel %vm449, %v450, %v448
        %v452 = vrsqrt.pop %v376
        %v453 = vmul.f32 %v376, %v452
        %vm454 = vcmp.eq.f32.partialorder %v376, inf
        %v455 = vsel %vm454, %v376, %v453
        %vm456 = vcmp.eq.f32.partialorder %v376, 0.0
        %v457 = vand.u32 %v376, 2147483648
        %v458 = vsel %vm456, %v457, %v455
        %v459 = vrsqrt.pop %v377
        %v460 = vmul.f32 %v377, %v459
        %vm461 = vcmp.eq.f32.partialorder %v377, inf
        %v462 = vsel %vm461, %v377, %v460
        %vm463 = vcmp.eq.f32.partialorder %v377, 0.0
        %v464 = vand.u32 %v377, 2147483648
        %v465 = vsel %vm463, %v464, %v462
        %v466 = vrsqrt.pop %v378
        %v467 = vmul.f32 %v378, %v466
        %vm468 = vcmp.eq.f32.partialorder %v378, inf
        %v469 = vsel %vm468, %v378, %v467
        %vm470 = vcmp.eq.f32.partialorder %v378, 0.0
        %v471 = vand.u32 %v378, 2147483648
        %v472 = vsel %vm470, %v471, %v469
        %v473 = vrsqrt.pop %v379
        %v474 = vmul.f32 %v379, %v473
        %vm475 = vcmp.eq.f32.partialorder %v379, inf
        %v476 = vsel %vm475, %v379, %v474
        %vm477 = vcmp.eq.f32.partialorder %v379, 0.0
        %v478 = vand.u32 %v379, 2147483648
        %v479 = vsel %vm477, %v478, %v476
        %v480 = vrsqrt.pop %v380
        %v481 = vmul.f32 %v380, %v480
        %vm482 = vcmp.eq.f32.partialorder %v380, inf
        %v483 = vsel %vm482, %v380, %v481
        %vm484 = vcmp.eq.f32.partialorder %v380, 0.0
        %v485 = vand.u32 %v380, 2147483648
        %v486 = vsel %vm484, %v485, %v483
        %v487 = vrsqrt.pop %v381
        %v488 = vmul.f32 %v381, %v487
        %vm489 = vcmp.eq.f32.partialorder %v381, inf
        %v490 = vsel %vm489, %v381, %v488
        %vm491 = vcmp.eq.f32.partialorder %v381, 0.0
        %v492 = vand.u32 %v381, 2147483648
        %v493 = vsel %vm491, %v492, %v490
        %v494 = vrcp.pop %v388
        %v495 = vmul.f32 %v286, %v494
        %v496 = vrcp.pop %v395
        %v497 = vmul.f32 %v287, %v496
        %v498 = vrcp.pop %v402
        %v499 = vmul.f32 %v288, %v498
        %v500 = vrcp.pop %v409
        %v501 = vmul.f32 %v289, %v500
        %v502 = vrcp.pop %v416
        %v503 = vmul.f32 %v290, %v502
        %v504 = vrcp.pop %v423
        %v505 = vmul.f32 %v291, %v504
        %v506 = vrcp.pop %v430
        %v507 = vmul.f32 %v292, %v506
        %v508 = vrcp.pop %v437
        %v509 = vmul.f32 %v293, %v508
        %v510 = vrcp.pop %v444
        %v511 = vmul.f32 %v294, %v510
        %v512 = vrcp.pop %v451
        %v513 = vmul.f32 %v295, %v512
        %v514 = vrcp.pop %v458
        %v515 = vmul.f32 %v296, %v514
        %v516 = vrcp.pop %v465
        %v517 = vmul.f32 %v297, %v516
        %v518 = vrcp.pop %v472
        %v519 = vmul.f32 %v298, %v518
        %v520 = vrcp.pop %v479
        %v521 = vmul.f32 %v299, %v520
        %v522 = vrcp.pop %v486
        %v523 = vmul.f32 %v300, %v522
        %v524 = vrcp.pop %v493
        %v525 = vmul.f32 %v301, %v524
        %v526 = vand.u32 2147483647, %v495
        %v527 = vand.u32 2147483647, %v497
        %v528 = vand.u32 2147483647, %v499
        %v529 = vand.u32 2147483647, %v501
        %v530 = vand.u32 2147483647, %v503
        %v531 = vand.u32 2147483647, %v505
        %v532 = vand.u32 2147483647, %v507
        %v533 = vand.u32 2147483647, %v509
        %v534 = vand.u32 2147483647, %v511
        %v535 = vand.u32 2147483647, %v513
        %v536 = vand.u32 2147483647, %v515
        %v537 = vand.u32 2147483647, %v517
        %v538 = vand.u32 2147483647, %v519
        %v539 = vand.u32 2147483647, %v521
        %v540 = vand.u32 2147483647, %v523
        %v541 = vand.u32 2147483647, %v525
        %542 = vmax.xlane.f32.xlu0 %v526
        %v543 = vpop.xlane.xlu0 %542
        %544 = vmax.xlane.f32.xlu0 %v527
        %v545 = vpop.xlane.xlu0 %544
        %546 = vmax.xlane.f32.xlu0 %v528
        %v547 = vpop.xlane.xlu0 %546
        %548 = vmax.xlane.f32.xlu0 %v529
        %v549 = vpop.xlane.xlu0 %548
        %550 = vmax.xlane.f32.xlu0 %v530
        %v551 = vpop.xlane.xlu0 %550
        %552 = vmax.xlane.f32.xlu0 %v531
        %v553 = vpop.xlane.xlu0 %552
        %554 = vmax.xlane.f32.xlu0 %v532
        %v555 = vpop.xlane.xlu0 %554
        %556 = vmax.xlane.f32.xlu0 %v533
        %v557 = vpop.xlane.xlu0 %556
        %558 = vmax.xlane.f32.xlu0 %v534
        %v559 = vpop.xlane.xlu0 %558
        %560 = vmax.xlane.f32.xlu0 %v535
        %v561 = vpop.xlane.xlu0 %560
        %562 = vmax.xlane.f32.xlu0 %v536
        %v563 = vpop.xlane.xlu0 %562
        %564 = vmax.xlane.f32.xlu0 %v537
        %v565 = vpop.xlane.xlu0 %564
        %566 = vmax.xlane.f32.xlu0 %v538
        %v567 = vpop.xlane.xlu0 %566
        %568 = vmax.xlane.f32.xlu0 %v539
        %v569 = vpop.xlane.xlu0 %568
        %570 = vmax.xlane.f32.xlu0 %v540
        %v571 = vpop.xlane.xlu0 %570
        %572 = vmax.xlane.f32.xlu0 %v541
        %v573 = vpop.xlane.xlu0 %572
        %v574 = vrcp.pop %v543
        %v575 = vmul.f32 127.0, %v574
        %v576 = vrcp.pop %v545
        %v577 = vmul.f32 127.0, %v576
        %v578 = vrcp.pop %v547
        %v579 = vmul.f32 127.0, %v578
        %v580 = vrcp.pop %v549
        %v581 = vmul.f32 127.0, %v580
        %v582 = vrcp.pop %v551
        %v583 = vmul.f32 127.0, %v582
        %v584 = vrcp.pop %v553
        %v585 = vmul.f32 127.0, %v584
        %v586 = vrcp.pop %v555
        %v587 = vmul.f32 127.0, %v586
        %v588 = vrcp.pop %v557
        %v589 = vmul.f32 127.0, %v588
        %v590 = vrcp.pop %v559
        %v591 = vmul.f32 127.0, %v590
        %v592 = vrcp.pop %v561
        %v593 = vmul.f32 127.0, %v592
        %v594 = vrcp.pop %v563
        %v595 = vmul.f32 127.0, %v594
        %v596 = vrcp.pop %v565
        %v597 = vmul.f32 127.0, %v596
        %v598 = vrcp.pop %v567
        %v599 = vmul.f32 127.0, %v598
        %v600 = vrcp.pop %v569
        %v601 = vmul.f32 127.0, %v600
        %v602 = vrcp.pop %v571
        %v603 = vmul.f32 127.0, %v602
        %v604 = vrcp.pop %v573
        %v605 = vmul.f32 127.0, %v604
        %v606 = vmul.f32 %v575, %v495
        %v607 = vmul.f32 %v577, %v497
        %v608 = vmul.f32 %v579, %v499
        %v609 = vmul.f32 %v581, %v501
        %v610 = vmul.f32 %v583, %v503
        %v611 = vmul.f32 %v585, %v505
        %v612 = vmul.f32 %v587, %v507
        %v613 = vmul.f32 %v589, %v509
        %v614 = vmul.f32 %v591, %v511
        %v615 = vmul.f32 %v593, %v513
        %v616 = vmul.f32 %v595, %v515
        %v617 = vmul.f32 %v597, %v517
        %v618 = vmul.f32 %v599, %v519
        %v619 = vmul.f32 %v601, %v521
        %v620 = vmul.f32 %v603, %v523
        %v621 = vmul.f32 %v605, %v525
        %v622 = vround.ne.pseudo %v606
        %v623 = vround.ne.pseudo %v607
        %v624 = vround.ne.pseudo %v608
        %v625 = vround.ne.pseudo %v609
        %v626 = vround.ne.pseudo %v610
        %v627 = vround.ne.pseudo %v611
        %v628 = vround.ne.pseudo %v612
        %v629 = vround.ne.pseudo %v613
        %v630 = vround.ne.pseudo %v614
        %v631 = vround.ne.pseudo %v615
        %v632 = vround.ne.pseudo %v616
        %v633 = vround.ne.pseudo %v617
        %v634 = vround.ne.pseudo %v618
        %v635 = vround.ne.pseudo %v619
        %v636 = vround.ne.pseudo %v620
        %v637 = vround.ne.pseudo %v621
        %v638 = vmax.f32 %v622, -128.0
        %v639 = vmax.f32 %v623, -128.0
        %v640 = vmax.f32 %v624, -128.0
        %v641 = vmax.f32 %v625, -128.0
        %v642 = vmax.f32 %v626, -128.0
        %v643 = vmax.f32 %v627, -128.0
        %v644 = vmax.f32 %v628, -128.0
        %v645 = vmax.f32 %v629, -128.0
        %v646 = vmax.f32 %v630, -128.0
        %v647 = vmax.f32 %v631, -128.0
        %v648 = vmax.f32 %v632, -128.0
        %v649 = vmax.f32 %v633, -128.0
        %v650 = vmax.f32 %v634, -128.0
        %v651 = vmax.f32 %v635, -128.0
        %v652 = vmax.f32 %v636, -128.0
        %v653 = vmax.f32 %v637, -128.0
        %v654 = vmin.f32 %v638, 127.0
        %v655 = vmin.f32 %v639, 127.0
        %v656 = vmin.f32 %v640, 127.0
        %v657 = vmin.f32 %v641, 127.0
        %v658 = vmin.f32 %v642, 127.0
        %v659 = vmin.f32 %v643, 127.0
        %v660 = vmin.f32 %v644, 127.0
        %v661 = vmin.f32 %v645, 127.0
        %v662 = vmin.f32 %v646, 127.0
        %v663 = vmin.f32 %v647, 127.0
        %v664 = vmin.f32 %v648, 127.0
        %v665 = vmin.f32 %v649, 127.0
        %v666 = vmin.f32 %v650, 127.0
        %v667 = vmin.f32 %v651, 127.0
        %v668 = vmin.f32 %v652, 127.0
        %v669 = vmin.f32 %v653, 127.0
        %v670 = vpack.c.bf16 %v655, %v654
        %v671 = vpack.c.bf16 %v657, %v656
        %v672 = vpack.c.bf16 %v659, %v658
        %v673 = vpack.c.bf16 %v661, %v660
        %v674 = vpack.c.bf16 %v663, %v662
        %v675 = vpack.c.bf16 %v665, %v664
        %v676 = vpack.c.bf16 %v667, %v666
        %v677 = vpack.c.bf16 %v669, %v668
        %v678 = vld [vmem:[#allocation5] sm:$0xff]
        %v679 = vld [vmem:[#allocation5 + $0x8] sm:$0xff]
        %v680 = vld [vmem:[#allocation5 + $0x10] sm:$0xff]
        %v681 = vld [vmem:[#allocation5 + $0x18] sm:$0xff]
        %v682 = vld [vmem:[#allocation5 + $0x20] sm:$0xff]
        %v683 = vld [vmem:[#allocation5 + $0x28] sm:$0xff]
        %v684 = vld [vmem:[#allocation5 + $0x30] sm:$0xff]
        %v685 = vld [vmem:[#allocation5 + $0x38] sm:$0xff]
        %v686 = vld [vmem:[#allocation5 + $0x40] sm:$0xff]
        %v687 = vld [vmem:[#allocation5 + $0x48] sm:$0xff]
        %v688 = vld [vmem:[#allocation5 + $0x50] sm:$0xff]
        %v689 = vld [vmem:[#allocation5 + $0x58] sm:$0xff]
        %v690 = vld [vmem:[#allocation5 + $0x60] sm:$0xff]
        %v691 = vld [vmem:[#allocation5 + $0x68] sm:$0xff]
        %v692 = vld [vmem:[#allocation5 + $0x70] sm:$0xff]
        %v693 = vld [vmem:[#allocation5 + $0x78] sm:$0xff]
        %v710 = vunpack.c.l.b16 %v678
        %v711 = vunpack.c.h.b16 %v678
        %v712 = vunpack.c.l.b16 %v679
        %v713 = vunpack.c.h.b16 %v679
        %v714 = vunpack.c.l.b16 %v680
        %v715 = vunpack.c.h.b16 %v680
        %v716 = vunpack.c.l.b16 %v681
        %v717 = vunpack.c.h.b16 %v681
        %v718 = vunpack.c.l.b16 %v682
        %v719 = vunpack.c.h.b16 %v682
        %v720 = vunpack.c.l.b16 %v683
        %v721 = vunpack.c.h.b16 %v683
        %v722 = vunpack.c.l.b16 %v684
        %v723 = vunpack.c.h.b16 %v684
        %v724 = vunpack.c.l.b16 %v685
        %v725 = vunpack.c.h.b16 %v685
        %v726 = vunpack.c.l.b16 %v686
        %v727 = vunpack.c.h.b16 %v686
        %v728 = vunpack.c.l.b16 %v687
        %v729 = vunpack.c.h.b16 %v687
        %v730 = vunpack.c.l.b16 %v688
        %v731 = vunpack.c.h.b16 %v688
        %v732 = vunpack.c.l.b16 %v689
        %v733 = vunpack.c.h.b16 %v689
        %v734 = vunpack.c.l.b16 %v690
        %v735 = vunpack.c.h.b16 %v690
        %v736 = vunpack.c.l.b16 %v691
        %v737 = vunpack.c.h.b16 %v691
        %v738 = vunpack.c.l.b16 %v692
        %v739 = vunpack.c.h.b16 %v692
        %v740 = vunpack.c.l.b16 %v693
        %v741 = vunpack.c.h.b16 %v693
        %v742 = vpack.c.b16 %v712, %v710
        %v743 = vpack.c.b16 %v713, %v711
        %v744 = vpack.c.b16 %v716, %v714
        %v745 = vpack.c.b16 %v717, %v715
        %v746 = vpack.c.b16 %v720, %v718
        %v747 = vpack.c.b16 %v721, %v719
        %v748 = vpack.c.b16 %v724, %v722
        %v749 = vpack.c.b16 %v725, %v723
        %v750 = vpack.c.b16 %v728, %v726
        %v751 = vpack.c.b16 %v729, %v727
        %v752 = vpack.c.b16 %v732, %v730
        %v753 = vpack.c.b16 %v733, %v731
        %v754 = vpack.c.b16 %v736, %v734
        %v755 = vpack.c.b16 %v737, %v735
        %v756 = vpack.c.b16 %v740, %v738
        %v757 = vpack.c.b16 %v741, %v739
        %774 = vmatprep.subr.bf16.mxu0 %v757
        %775 = vmatpush1.bf16.msra.mxu0 %v756
        %776 = vmatprep.subr.bf16.mxu0 %v755
        %777 = vmatpush1.bf16.msra.mxu0 %v754
        %778 = vmatprep.subr.bf16.mxu0 %v753
        %779 = vmatpush1.bf16.msra.mxu0 %v752
        %780 = vmatprep.subr.bf16.mxu0 %v751
        %781 = vmatpush1.bf16.msra.mxu0 %v750
        %782 = vmatprep.subr.bf16.mxu0 %v749
        %783 = vmatpush1.bf16.msra.mxu0 %v748
        %784 = vmatprep.subr.bf16.mxu0 %v747
        %785 = vmatpush1.bf16.msra.mxu0 %v746
        %786 = vmatprep.subr.bf16.mxu0 %v745
        %787 = vmatpush1.bf16.msra.mxu0 %v744
        %788 = vmatprep.subr.bf16.mxu0 %v743
        %789 = vmatpush1.bf16.msra.mxu0 %v742
        %790 = vmatprep.subr.bf16.mxu0 0
        %791 = vmatpush2.bf16.msra.mxu0 0
        %792 = vmatprep.subr.bf16.mxu0 0
        %793 = vmatpush2.bf16.msra.mxu0 0
        %794 = vmatprep.subr.bf16.mxu0 0
        %795 = vmatpush2.bf16.msra.mxu0 0
        %796 = vmatprep.subr.bf16.mxu0 0
        %797 = vmatpush2.bf16.msra.mxu0 0
        %798 = vmatprep.subr.bf16.mxu0 0
        %799 = vmatpush2.bf16.msra.mxu0 0
        %800 = vmatprep.subr.bf16.mxu0 0
        %801 = vmatpush2.bf16.msra.mxu0 0
        %802 = vmatprep.subr.bf16.mxu0 0
        %803 = vmatpush2.bf16.msra.mxu0 0
        %804 = vmatprep.subr.bf16.mxu0 0
        %805 = vmatpush2.bf16.msra.mxu0 0
        %806 = vmatprep.mubr.bf16.mxu0 0
        %807 = vmatmul.mubr.bf16.gmra.mxu0 %v670
        %v808 = vpop.f32.mrf.mxu0
        %v809 = vadd.f32 0.0, %v808
        %v810 = vpop.f32.mrf.mxu0
        %v811 = vadd.f32 0.0, %v810
        %v812 = vpop.f32.mrf.mxu0
        %v813 = vadd.f32 0.0, %v812
        %v814 = vpop.f32.mrf.mxu0
        %v815 = vadd.f32 0.0, %v814
        %816 = vmatprep.mubr.bf16.mxu0 0
        %817 = vmatmul.mubr.bf16.gmra.mxu0 %v671
        %v818 = vpop.f32.mrf.mxu0
        %v819 = vadd.f32 0.0, %v818
        %v820 = vpop.f32.mrf.mxu0
        %v821 = vadd.f32 0.0, %v820
        %v822 = vpop.f32.mrf.mxu0
        %v823 = vadd.f32 0.0, %v822
        %v824 = vpop.f32.mrf.mxu0
        %v825 = vadd.f32 0.0, %v824
        %826 = vmatprep.mubr.bf16.mxu0 0
        %827 = vmatmul.mubr.bf16.gmra.mxu0 %v672
        %v828 = vpop.f32.mrf.mxu0
        %v829 = vadd.f32 0.0, %v828
        %v830 = vpop.f32.mrf.mxu0
        %v831 = vadd.f32 0.0, %v830
        %v832 = vpop.f32.mrf.mxu0
        %v833 = vadd.f32 0.0, %v832
        %v834 = vpop.f32.mrf.mxu0
        %v835 = vadd.f32 0.0, %v834
        %836 = vmatprep.mubr.bf16.mxu0 0
        %837 = vmatmul.mubr.bf16.gmra.mxu0 %v673
        %v838 = vpop.f32.mrf.mxu0
        %v839 = vadd.f32 0.0, %v838
        %v840 = vpop.f32.mrf.mxu0
        %v841 = vadd.f32 0.0, %v840
        %v842 = vpop.f32.mrf.mxu0
        %v843 = vadd.f32 0.0, %v842
        %v844 = vpop.f32.mrf.mxu0
        %v845 = vadd.f32 0.0, %v844
        %846 = vmatprep.mubr.bf16.mxu0 0
        %847 = vmatmul.mubr.bf16.gmra.mxu0 %v674
        %v848 = vpop.f32.mrf.mxu0
        %v849 = vadd.f32 0.0, %v848
        %v850 = vpop.f32.mrf.mxu0
        %v851 = vadd.f32 0.0, %v850
        %v852 = vpop.f32.mrf.mxu0
        %v853 = vadd.f32 0.0, %v852
        %v854 = vpop.f32.mrf.mxu0
        %v855 = vadd.f32 0.0, %v854
        %856 = vmatprep.mubr.bf16.mxu0 0
        %857 = vmatmul.mubr.bf16.gmra.mxu0 %v675
        %v858 = vpop.f32.mrf.mxu0
        %v859 = vadd.f32 0.0, %v858
        %v860 = vpop.f32.mrf.mxu0
        %v861 = vadd.f32 0.0, %v860
        %v862 = vpop.f32.mrf.mxu0
        %v863 = vadd.f32 0.0, %v862
        %v864 = vpop.f32.mrf.mxu0
        %v865 = vadd.f32 0.0, %v864
        %866 = vmatprep.mubr.bf16.mxu0 0
        %867 = vmatmul.mubr.bf16.gmra.mxu0 %v676
        %v868 = vpop.f32.mrf.mxu0
        %v869 = vadd.f32 0.0, %v868
        %v870 = vpop.f32.mrf.mxu0
        %v871 = vadd.f32 0.0, %v870
        %v872 = vpop.f32.mrf.mxu0
        %v873 = vadd.f32 0.0, %v872
        %v874 = vpop.f32.mrf.mxu0
        %v875 = vadd.f32 0.0, %v874
        %876 = vmatprep.mubr.bf16.mxu0 0
        %877 = vmatmul.mubr.bf16.gmra.mxu0 %v677
        %v878 = vpop.f32.mrf.mxu0
        %v879 = vadd.f32 0.0, %v878
        %v880 = vpop.f32.mrf.mxu0
        %v881 = vadd.f32 0.0, %v880
        %v882 = vpop.f32.mrf.mxu0
        %v883 = vadd.f32 0.0, %v882
        %v884 = vpop.f32.mrf.mxu0
        %v885 = vadd.f32 0.0, %v884
        %886 = vdwg.mxu0
        %v887 = vmul.f32 %v543, 0.007874016
        %v888 = vmul.f32 %v545, 0.007874016
        %v889 = vmul.f32 %v547, 0.007874016
        %v890 = vmul.f32 %v549, 0.007874016
        %v891 = vmul.f32 %v551, 0.007874016
        %v892 = vmul.f32 %v553, 0.007874016
        %v893 = vmul.f32 %v555, 0.007874016
        %v894 = vmul.f32 %v557, 0.007874016
        %v895 = vmul.f32 %v559, 0.007874016
        %v896 = vmul.f32 %v561, 0.007874016
        %v897 = vmul.f32 %v563, 0.007874016
        %v898 = vmul.f32 %v565, 0.007874016
        %v899 = vmul.f32 %v567, 0.007874016
        %v900 = vmul.f32 %v569, 0.007874016
        %v901 = vmul.f32 %v571, 0.007874016
        %v902 = vmul.f32 %v573, 0.007874016
        %v903 = vmul.f32 %v809, %v887
        %v904 = vmul.f32 %v811, %v887
        %v905 = vmul.f32 %v813, %v888
        %v906 = vmul.f32 %v815, %v888
        %v907 = vmul.f32 %v819, %v889
        %v908 = vmul.f32 %v821, %v889
        %v909 = vmul.f32 %v823, %v890
        %v910 = vmul.f32 %v825, %v890
        %v911 = vmul.f32 %v829, %v891
        %v912 = vmul.f32 %v831, %v891
        %v913 = vmul.f32 %v833, %v892
        %v914 = vmul.f32 %v835, %v892
        %v915 = vmul.f32 %v839, %v893
        %v916 = vmul.f32 %v841, %v893
        %v917 = vmul.f32 %v843, %v894
        %v918 = vmul.f32 %v845, %v894
        %v919 = vmul.f32 %v849, %v895
        %v920 = vmul.f32 %v851, %v895
        %v921 = vmul.f32 %v853, %v896
        %v922 = vmul.f32 %v855, %v896
        %v923 = vmul.f32 %v859, %v897
        %v924 = vmul.f32 %v861, %v897
        %v925 = vmul.f32 %v863, %v898
        %v926 = vmul.f32 %v865, %v898
        %v927 = vmul.f32 %v869, %v899
        %v928 = vmul.f32 %v871, %v899
        %v929 = vmul.f32 %v873, %v900
        %v930 = vmul.f32 %v875, %v900
        %v931 = vmul.f32 %v879, %v901
        %v932 = vmul.f32 %v881, %v901
        %v933 = vmul.f32 %v883, %v902
        %v934 = vmul.f32 %v885, %v902
        %v935 = vxor.u32 %v903, 2147483648
        %v936 = vxor.u32 %v905, 2147483648
        %v937 = vxor.u32 %v907, 2147483648
        %v938 = vxor.u32 %v909, 2147483648
        %v939 = vxor.u32 %v911, 2147483648
        %v940 = vxor.u32 %v913, 2147483648
        %v941 = vxor.u32 %v915, 2147483648
        %v942 = vxor.u32 %v917, 2147483648
        %v943 = vxor.u32 %v919, 2147483648
        %v944 = vxor.u32 %v921, 2147483648
        %v945 = vxor.u32 %v923, 2147483648
        %v946 = vxor.u32 %v925, 2147483648
        %v947 = vxor.u32 %v927, 2147483648
        %v948 = vxor.u32 %v929, 2147483648
        %v949 = vxor.u32 %v931, 2147483648
        %v950 = vxor.u32 %v933, 2147483648
        %v951 = vmul.f32 %v935, 1.442695
        %v952 = vpow.pop %v951
        %v953 = vmul.f32 %v936, 1.442695
        %v954 = vpow.pop %v953
        %v955 = vmul.f32 %v937, 1.442695
        %v956 = vpow.pop %v955
        %v957 = vmul.f32 %v938, 1.442695
        %v958 = vpow.pop %v957
        %v959 = vmul.f32 %v939, 1.442695
        %v960 = vpow.pop %v959
        %v961 = vmul.f32 %v940, 1.442695
        %v962 = vpow.pop %v961
        %v963 = vmul.f32 %v941, 1.442695
        %v964 = vpow.pop %v963
        %v965 = vmul.f32 %v942, 1.442695
        %v966 = vpow.pop %v965
        %v967 = vmul.f32 %v943, 1.442695
        %v968 = vpow.pop %v967
        %v969 = vmul.f32 %v944, 1.442695
        %v970 = vpow.pop %v969
        %v971 = vmul.f32 %v945, 1.442695
        %v972 = vpow.pop %v971
        %v973 = vmul.f32 %v946, 1.442695
        %v974 = vpow.pop %v973
        %v975 = vmul.f32 %v947, 1.442695
        %v976 = vpow.pop %v975
        %v977 = vmul.f32 %v948, 1.442695
        %v978 = vpow.pop %v977
        %v979 = vmul.f32 %v949, 1.442695
        %v980 = vpow.pop %v979
        %v981 = vmul.f32 %v950, 1.442695
        %v982 = vpow.pop %v981
        %v983 = vadd.f32 %v952, 1.0
        %v984 = vadd.f32 %v954, 1.0
        %v985 = vadd.f32 %v956, 1.0
        %v986 = vadd.f32 %v958, 1.0
        %v987 = vadd.f32 %v960, 1.0
        %v988 = vadd.f32 %v962, 1.0
        %v989 = vadd.f32 %v964, 1.0
        %v990 = vadd.f32 %v966, 1.0
        %v991 = vadd.f32 %v968, 1.0
        %v992 = vadd.f32 %v970, 1.0
        %v993 = vadd.f32 %v972, 1.0
        %v994 = vadd.f32 %v974, 1.0
        %v995 = vadd.f32 %v976, 1.0
        %v996 = vadd.f32 %v978, 1.0
        %v997 = vadd.f32 %v980, 1.0
        %v998 = vadd.f32 %v982, 1.0
        %v999 = vrcp.pop %v983
        %v1000 = vmul.f32 1.0, %v999
        %v1001 = vrcp.pop %v984
        %v1002 = vmul.f32 1.0, %v1001
        %v1003 = vrcp.pop %v985
        %v1004 = vmul.f32 1.0, %v1003
        %v1005 = vrcp.pop %v986
        %v1006 = vmul.f32 1.0, %v1005
        %v1007 = vrcp.pop %v987
        %v1008 = vmul.f32 1.0, %v1007
        %v1009 = vrcp.pop %v988
        %v1010 = vmul.f32 1.0, %v1009
        %v1011 = vrcp.pop %v989
        %v1012 = vmul.f32 1.0, %v1011
        %v1013 = vrcp.pop %v990
        %v1014 = vmul.f32 1.0, %v1013
        %v1015 = vrcp.pop %v991
        %v1016 = vmul.f32 1.0, %v1015
        %v1017 = vrcp.pop %v992
        %v1018 = vmul.f32 1.0, %v1017
        %v1019 = vrcp.pop %v993
        %v1020 = vmul.f32 1.0, %v1019
        %v1021 = vrcp.pop %v994
        %v1022 = vmul.f32 1.0, %v1021
        %v1023 = vrcp.pop %v995
        %v1024 = vmul.f32 1.0, %v1023
        %v1025 = vrcp.pop %v996
        %v1026 = vmul.f32 1.0, %v1025
        %v1027 = vrcp.pop %v997
        %v1028 = vmul.f32 1.0, %v1027
        %v1029 = vrcp.pop %v998
        %v1030 = vmul.f32 1.0, %v1029
        %v1031 = vmul.f32 %v903, %v1000
        %v1032 = vmul.f32 %v905, %v1002
        %v1033 = vmul.f32 %v907, %v1004
        %v1034 = vmul.f32 %v909, %v1006
        %v1035 = vmul.f32 %v911, %v1008
        %v1036 = vmul.f32 %v913, %v1010
        %v1037 = vmul.f32 %v915, %v1012
        %v1038 = vmul.f32 %v917, %v1014
        %v1039 = vmul.f32 %v919, %v1016
        %v1040 = vmul.f32 %v921, %v1018
        %v1041 = vmul.f32 %v923, %v1020
        %v1042 = vmul.f32 %v925, %v1022
        %v1043 = vmul.f32 %v927, %v1024
        %v1044 = vmul.f32 %v929, %v1026
        %v1045 = vmul.f32 %v931, %v1028
        %v1046 = vmul.f32 %v933, %v1030
        %v1047 = vmul.f32 %v1031, %v904
        %v1048 = vmul.f32 %v1032, %v906
        %v1049 = vmul.f32 %v1033, %v908
        %v1050 = vmul.f32 %v1034, %v910
        %v1051 = vmul.f32 %v1035, %v912
        %v1052 = vmul.f32 %v1036, %v914
        %v1053 = vmul.f32 %v1037, %v916
        %v1054 = vmul.f32 %v1038, %v918
        %v1055 = vmul.f32 %v1039, %v920
        %v1056 = vmul.f32 %v1040, %v922
        %v1057 = vmul.f32 %v1041, %v924
        %v1058 = vmul.f32 %v1042, %v926
        %v1059 = vmul.f32 %v1043, %v928
        %v1060 = vmul.f32 %v1044, %v930
        %v1061 = vmul.f32 %v1045, %v932
        %v1062 = vmul.f32 %v1046, %v934
        %v1063 = vpack.c.bf16 %v1048, %v1047
        %v1064 = vpack.c.bf16 %v1050, %v1049
        %v1065 = vpack.c.bf16 %v1052, %v1051
        %v1066 = vpack.c.bf16 %v1054, %v1053
        %v1067 = vpack.c.bf16 %v1056, %v1055
        %v1068 = vpack.c.bf16 %v1058, %v1057
        %v1069 = vpack.c.bf16 %v1060, %v1059
        %v1070 = vpack.c.bf16 %v1062, %v1061
        %v1071 = vunpack.c.l.bf16 %v1063
        %v1072 = vunpack.c.h.bf16 %v1063
        %v1073 = vunpack.c.l.bf16 %v1064
        %v1074 = vunpack.c.h.bf16 %v1064
        %v1075 = vunpack.c.l.bf16 %v1065
        %v1076 = vunpack.c.h.bf16 %v1065
        %v1077 = vunpack.c.l.bf16 %v1066
        %v1078 = vunpack.c.h.bf16 %v1066
        %v1079 = vunpack.c.l.bf16 %v1067
        %v1080 = vunpack.c.h.bf16 %v1067
        %v1081 = vunpack.c.l.bf16 %v1068
        %v1082 = vunpack.c.h.bf16 %v1068
        %v1083 = vunpack.c.l.bf16 %v1069
        %v1084 = vunpack.c.h.bf16 %v1069
        %v1085 = vunpack.c.l.bf16 %v1070
        %v1086 = vunpack.c.h.bf16 %v1070
        %v1087 = vsub.f32 %v1047, %v1071
        %v1088 = vsub.f32 %v1048, %v1072
        %v1089 = vsub.f32 %v1049, %v1073
        %v1090 = vsub.f32 %v1050, %v1074
        %v1091 = vsub.f32 %v1051, %v1075
        %v1092 = vsub.f32 %v1052, %v1076
        %v1093 = vsub.f32 %v1053, %v1077
        %v1094 = vsub.f32 %v1054, %v1078
        %v1095 = vsub.f32 %v1055, %v1079
        %v1096 = vsub.f32 %v1056, %v1080
        %v1097 = vsub.f32 %v1057, %v1081
        %v1098 = vsub.f32 %v1058, %v1082
        %v1099 = vsub.f32 %v1059, %v1083
        %v1100 = vsub.f32 %v1060, %v1084
        %v1101 = vsub.f32 %v1061, %v1085
        %v1102 = vsub.f32 %v1062, %v1086
        %v1103 = vpack.c.bf16 %v1088, %v1087
        %v1104 = vpack.c.bf16 %v1090, %v1089
        %v1105 = vpack.c.bf16 %v1092, %v1091
        %v1106 = vpack.c.bf16 %v1094, %v1093
        %v1107 = vpack.c.bf16 %v1096, %v1095
        %v1108 = vpack.c.bf16 %v1098, %v1097
        %v1109 = vpack.c.bf16 %v1100, %v1099
        %v1110 = vpack.c.bf16 %v1102, %v1101
        %v1111 = vunpack.c.l.bf16 %v1103
        %v1112 = vunpack.c.h.bf16 %v1103
        %v1113 = vunpack.c.l.bf16 %v1104
        %v1114 = vunpack.c.h.bf16 %v1104
        %v1115 = vunpack.c.l.bf16 %v1105
        %v1116 = vunpack.c.h.bf16 %v1105
        %v1117 = vunpack.c.l.bf16 %v1106
        %v1118 = vunpack.c.h.bf16 %v1106
        %v1119 = vunpack.c.l.bf16 %v1107
        %v1120 = vunpack.c.h.bf16 %v1107
        %v1121 = vunpack.c.l.bf16 %v1108
        %v1122 = vunpack.c.h.bf16 %v1108
        %v1123 = vunpack.c.l.bf16 %v1109
        %v1124 = vunpack.c.h.bf16 %v1109
        %v1125 = vunpack.c.l.bf16 %v1110
        %v1126 = vunpack.c.h.bf16 %v1110
        %v1127 = vsub.f32 %v1087, %v1111
        %v1128 = vsub.f32 %v1088, %v1112
        %v1129 = vsub.f32 %v1089, %v1113
        %v1130 = vsub.f32 %v1090, %v1114
        %v1131 = vsub.f32 %v1091, %v1115
        %v1132 = vsub.f32 %v1092, %v1116
        %v1133 = vsub.f32 %v1093, %v1117
        %v1134 = vsub.f32 %v1094, %v1118
        %v1135 = vsub.f32 %v1095, %v1119
        %v1136 = vsub.f32 %v1096, %v1120
        %v1137 = vsub.f32 %v1097, %v1121
        %v1138 = vsub.f32 %v1098, %v1122
        %v1139 = vsub.f32 %v1099, %v1123
        %v1140 = vsub.f32 %v1100, %v1124
        %v1141 = vsub.f32 %v1101, %v1125
        %v1142 = vsub.f32 %v1102, %v1126
        %v1143 = vpack.c.bf16 %v1128, %v1127
        %v1144 = vpack.c.bf16 %v1130, %v1129
        %v1145 = vpack.c.bf16 %v1132, %v1131
        %v1146 = vpack.c.bf16 %v1134, %v1133
        %v1147 = vpack.c.bf16 %v1136, %v1135
        %v1148 = vpack.c.bf16 %v1138, %v1137
        %v1149 = vpack.c.bf16 %v1140, %v1139
        %v1150 = vpack.c.bf16 %v1142, %v1141
        %v1151 = vld [vmem:[#allocation7] sm:$0xf]
        %v1152 = vld [vmem:[#allocation7 + $0x4] sm:$0xf]
        %v1153 = vld [vmem:[#allocation7 + $0x8] sm:$0xf]
        %v1154 = vld [vmem:[#allocation7 + $0xc] sm:$0xf]
        %v1155 = vld [vmem:[#allocation7 + $0x10] sm:$0xf]
        %v1156 = vld [vmem:[#allocation7 + $0x14] sm:$0xf]
        %v1157 = vld [vmem:[#allocation7 + $0x18] sm:$0xf]
        %v1158 = vld [vmem:[#allocation7 + $0x1c] sm:$0xf]
        %v1159 = vld [vmem:[#allocation7 + $0x20] sm:$0xf]
        %v1160 = vld [vmem:[#allocation7 + $0x24] sm:$0xf]
        %v1161 = vld [vmem:[#allocation7 + $0x28] sm:$0xf]
        %v1162 = vld [vmem:[#allocation7 + $0x2c] sm:$0xf]
        %v1163 = vld [vmem:[#allocation7 + $0x30] sm:$0xf]
        %v1164 = vld [vmem:[#allocation7 + $0x34] sm:$0xf]
        %v1165 = vld [vmem:[#allocation7 + $0x38] sm:$0xf]
        %v1166 = vld [vmem:[#allocation7 + $0x3c] sm:$0xf]
        %v1183 = vunpack.c.l.b16 %v1151
        %v1184 = vunpack.c.l.b16 %v1152
        %v1185 = vunpack.c.l.b16 %v1153
        %v1186 = vunpack.c.l.b16 %v1154
        %v1187 = vunpack.c.l.b16 %v1155
        %v1188 = vunpack.c.l.b16 %v1156
        %v1189 = vunpack.c.l.b16 %v1157
        %v1190 = vunpack.c.l.b16 %v1158
        %v1191 = vunpack.c.l.b16 %v1159
        %v1192 = vunpack.c.l.b16 %v1160
        %v1193 = vunpack.c.l.b16 %v1161
        %v1194 = vunpack.c.l.b16 %v1162
        %v1195 = vunpack.c.l.b16 %v1163
        %v1196 = vunpack.c.l.b16 %v1164
        %v1197 = vunpack.c.l.b16 %v1165
        %v1198 = vunpack.c.l.b16 %v1166
        %v1199 = vpack.c.b16 %v1184, %v1183
        %v1200 = vpack.c.b16 %v1186, %v1185
        %v1201 = vpack.c.b16 %v1188, %v1187
        %v1202 = vpack.c.b16 %v1190, %v1189
        %v1203 = vpack.c.b16 %v1192, %v1191
        %v1204 = vpack.c.b16 %v1194, %v1193
        %v1205 = vpack.c.b16 %v1196, %v1195
        %v1206 = vpack.c.b16 %v1198, %v1197
        %1215 = vmatprep.subr.bf16.mxu0 0
        %1216 = vmatpush1.bf16.msra.mxu0 %v1206
        %1217 = vmatprep.subr.bf16.mxu0 0
        %1218 = vmatpush1.bf16.msra.mxu0 %v1205
        %1219 = vmatprep.subr.bf16.mxu0 0
        %1220 = vmatpush1.bf16.msra.mxu0 %v1204
        %1221 = vmatprep.subr.bf16.mxu0 0
        %1222 = vmatpush1.bf16.msra.mxu0 %v1203
        %1223 = vmatprep.subr.bf16.mxu0 0
        %1224 = vmatpush1.bf16.msra.mxu0 %v1202
        %1225 = vmatprep.subr.bf16.mxu0 0
        %1226 = vmatpush1.bf16.msra.mxu0 %v1201
        %1227 = vmatprep.subr.bf16.mxu0 0
        %1228 = vmatpush1.bf16.msra.mxu0 %v1200
        %1229 = vmatprep.subr.bf16.mxu0 0
        %1230 = vmatpush1.bf16.msra.mxu0 %v1199
        %1231 = vmatprep.subr.bf16.mxu0 0
        %1232 = vmatpush2.bf16.msra.mxu0 0
        %1233 = vmatprep.subr.bf16.mxu0 0
        %1234 = vmatpush2.bf16.msra.mxu0 0
        %1235 = vmatprep.subr.bf16.mxu0 0
        %1236 = vmatpush2.bf16.msra.mxu0 0
        %1237 = vmatprep.subr.bf16.mxu0 0
        %1238 = vmatpush2.bf16.msra.mxu0 0
        %1239 = vmatprep.subr.bf16.mxu0 0
        %1240 = vmatpush2.bf16.msra.mxu0 0
        %1241 = vmatprep.subr.bf16.mxu0 0
        %1242 = vmatpush2.bf16.msra.mxu0 0
        %1243 = vmatprep.subr.bf16.mxu0 0
        %1244 = vmatpush2.bf16.msra.mxu0 0
        %1245 = vmatprep.subr.bf16.mxu0 0
        %1246 = vmatpush2.bf16.msra.mxu0 0
        %1247 = vmatprep.mubr.bf16.mxu0 0
        %1248 = vmatmul.mubr.bf16.gmra.mxu0 %v1103
        %v1249 = vpop.f32.mrf.mxu0
        %v1250 = vadd.f32 0.0, %v1249
        %v1251 = vpop.f32.mrf.mxu0
        %v1252 = vpop.f32.mrf.mxu0
        %v1253 = vadd.f32 0.0, %v1252
        %v1254 = vpop.f32.mrf.mxu0
        %1255 = vmatprep.mubr.bf16.mxu0 0
        %1256 = vmatmul.mubr.bf16.gmra.mxu0 %v1104
        %v1257 = vpop.f32.mrf.mxu0
        %v1258 = vadd.f32 0.0, %v1257
        %v1259 = vpop.f32.mrf.mxu0
        %v1260 = vpop.f32.mrf.mxu0
        %v1261 = vadd.f32 0.0, %v1260
        %v1262 = vpop.f32.mrf.mxu0
        %1263 = vmatprep.mubr.bf16.mxu0 0
        %1264 = vmatmul.mubr.bf16.gmra.mxu0 %v1105
        %v1265 = vpop.f32.mrf.mxu0
        %v1266 = vadd.f32 0.0, %v1265
        %v1267 = vpop.f32.mrf.mxu0
        %v1268 = vpop.f32.mrf.mxu0
        %v1269 = vadd.f32 0.0, %v1268
        %v1270 = vpop.f32.mrf.mxu0
        %1271 = vmatprep.mubr.bf16.mxu0 0
        %1272 = vmatmul.mubr.bf16.gmra.mxu0 %v1106
        %v1273 = vpop.f32.mrf.mxu0
        %v1274 = vadd.f32 0.0, %v1273
        %v1275 = vpop.f32.mrf.mxu0
        %v1276 = vpop.f32.mrf.mxu0
        %v1277 = vadd.f32 0.0, %v1276
        %v1278 = vpop.f32.mrf.mxu0
        %1279 = vmatprep.mubr.bf16.mxu0 0
        %1280 = vmatmul.mubr.bf16.gmra.mxu0 %v1107
        %v1281 = vpop.f32.mrf.mxu0
        %v1282 = vadd.f32 0.0, %v1281
        %v1283 = vpop.f32.mrf.mxu0
        %v1284 = vpop.f32.mrf.mxu0
        %v1285 = vadd.f32 0.0, %v1284
        %v1286 = vpop.f32.mrf.mxu0
        %1287 = vmatprep.mubr.bf16.mxu0 0
        %1288 = vmatmul.mubr.bf16.gmra.mxu0 %v1108
        %v1289 = vpop.f32.mrf.mxu0
        %v1290 = vadd.f32 0.0, %v1289
        %v1291 = vpop.f32.mrf.mxu0
        %v1292 = vpop.f32.mrf.mxu0
        %v1293 = vadd.f32 0.0, %v1292
        %v1294 = vpop.f32.mrf.mxu0
        %1295 = vmatprep.mubr.bf16.mxu0 0
        %1296 = vmatmul.mubr.bf16.gmra.mxu0 %v1109
        %v1297 = vpop.f32.mrf.mxu0
        %v1298 = vadd.f32 0.0, %v1297
        %v1299 = vpop.f32.mrf.mxu0
        %v1300 = vpop.f32.mrf.mxu0
        %v1301 = vadd.f32 0.0, %v1300
        %v1302 = vpop.f32.mrf.mxu0
        %1303 = vmatprep.mubr.bf16.mxu0 0
        %1304 = vmatmul.mubr.bf16.gmra.mxu0 %v1110
        %v1305 = vpop.f32.mrf.mxu0
        %v1306 = vadd.f32 0.0, %v1305
        %v1307 = vpop.f32.mrf.mxu0
        %v1308 = vpop.f32.mrf.mxu0
        %v1309 = vadd.f32 0.0, %v1308
        %v1310 = vpop.f32.mrf.mxu0
        %1311 = vdwg.mxu0
        %1312 = vmatprep.subr.bf16.mxu0 0
        %1313 = vmatpush1.bf16.msra.mxu0 %v1206
        %1314 = vmatprep.subr.bf16.mxu0 0
        %1315 = vmatpush1.bf16.msra.mxu0 %v1205
        %1316 = vmatprep.subr.bf16.mxu0 0
        %1317 = vmatpush1.bf16.msra.mxu0 %v1204
        %1318 = vmatprep.subr.bf16.mxu0 0
        %1319 = vmatpush1.bf16.msra.mxu0 %v1203
        %1320 = vmatprep.subr.bf16.mxu0 0
        %1321 = vmatpush1.bf16.msra.mxu0 %v1202
        %1322 = vmatprep.subr.bf16.mxu0 0
        %1323 = vmatpush1.bf16.msra.mxu0 %v1201
        %1324 = vmatprep.subr.bf16.mxu0 0
        %1325 = vmatpush1.bf16.msra.mxu0 %v1200
        %1326 = vmatprep.subr.bf16.mxu0 0
        %1327 = vmatpush1.bf16.msra.mxu0 %v1199
        %1328 = vmatprep.subr.bf16.mxu0 0
        %1329 = vmatpush2.bf16.msra.mxu0 0
        %1330 = vmatprep.subr.bf16.mxu0 0
        %1331 = vmatpush2.bf16.msra.mxu0 0
        %1332 = vmatprep.subr.bf16.mxu0 0
        %1333 = vmatpush2.bf16.msra.mxu0 0
        %1334 = vmatprep.subr.bf16.mxu0 0
        %1335 = vmatpush2.bf16.msra.mxu0 0
        %1336 = vmatprep.subr.bf16.mxu0 0
        %1337 = vmatpush2.bf16.msra.mxu0 0
        %1338 = vmatprep.subr.bf16.mxu0 0
        %1339 = vmatpush2.bf16.msra.mxu0 0
        %1340 = vmatprep.subr.bf16.mxu0 0
        %1341 = vmatpush2.bf16.msra.mxu0 0
        %1342 = vmatprep.subr.bf16.mxu0 0
        %1343 = vmatpush2.bf16.msra.mxu0 0
        %1344 = vmatprep.mubr.bf16.mxu0 0
        %1345 = vmatmul.mubr.bf16.gmra.mxu0 %v1063
        %v1346 = vpop.f32.mrf.mxu0
        %v1347 = vadd.f32 %v1250, %v1346
        %v1348 = vpop.f32.mrf.mxu0
        %v1349 = vpop.f32.mrf.mxu0
        %v1350 = vadd.f32 %v1253, %v1349
        %v1351 = vpop.f32.mrf.mxu0
        %1352 = vmatprep.mubr.bf16.mxu0 0
        %1353 = vmatmul.mubr.bf16.gmra.mxu0 %v1064
        %v1354 = vpop.f32.mrf.mxu0
        %v1355 = vadd.f32 %v1258, %v1354
        %v1356 = vpop.f32.mrf.mxu0
        %v1357 = vpop.f32.mrf.mxu0
        %v1358 = vadd.f32 %v1261, %v1357
        %v1359 = vpop.f32.mrf.mxu0
        %1360 = vmatprep.mubr.bf16.mxu0 0
        %1361 = vmatmul.mubr.bf16.gmra.mxu0 %v1065
        %v1362 = vpop.f32.mrf.mxu0
        %v1363 = vadd.f32 %v1266, %v1362
        %v1364 = vpop.f32.mrf.mxu0
        %v1365 = vpop.f32.mrf.mxu0
        %v1366 = vadd.f32 %v1269, %v1365
        %v1367 = vpop.f32.mrf.mxu0
        %1368 = vmatprep.mubr.bf16.mxu0 0
        %1369 = vmatmul.mubr.bf16.gmra.mxu0 %v1066
        %v1370 = vpop.f32.mrf.mxu0
        %v1371 = vadd.f32 %v1274, %v1370
        %v1372 = vpop.f32.mrf.mxu0
        %v1373 = vpop.f32.mrf.mxu0
        %v1374 = vadd.f32 %v1277, %v1373
        %v1375 = vpop.f32.mrf.mxu0
        %1376 = vmatprep.mubr.bf16.mxu0 0
        %1377 = vmatmul.mubr.bf16.gmra.mxu0 %v1067
        %v1378 = vpop.f32.mrf.mxu0
        %v1379 = vadd.f32 %v1282, %v1378
        %v1380 = vpop.f32.mrf.mxu0
        %v1381 = vpop.f32.mrf.mxu0
        %v1382 = vadd.f32 %v1285, %v1381
        %v1383 = vpop.f32.mrf.mxu0
        %1384 = vmatprep.mubr.bf16.mxu0 0
        %1385 = vmatmul.mubr.bf16.gmra.mxu0 %v1068
        %v1386 = vpop.f32.mrf.mxu0
        %v1387 = vadd.f32 %v1290, %v1386
        %v1388 = vpop.f32.mrf.mxu0
        %v1389 = vpop.f32.mrf.mxu0
        %v1390 = vadd.f32 %v1293, %v1389
        %v1391 = vpop.f32.mrf.mxu0
        %1392 = vmatprep.mubr.bf16.mxu0 0
        %1393 = vmatmul.mubr.bf16.gmra.mxu0 %v1069
        %v1394 = vpop.f32.mrf.mxu0
        %v1395 = vadd.f32 %v1298, %v1394
        %v1396 = vpop.f32.mrf.mxu0
        %v1397 = vpop.f32.mrf.mxu0
        %v1398 = vadd.f32 %v1301, %v1397
        %v1399 = vpop.f32.mrf.mxu0
        %1400 = vmatprep.mubr.bf16.mxu0 0
        %1401 = vmatmul.mubr.bf16.gmra.mxu0 %v1070
        %v1402 = vpop.f32.mrf.mxu0
        %v1403 = vadd.f32 %v1306, %v1402
        %v1404 = vpop.f32.mrf.mxu0
        %v1405 = vpop.f32.mrf.mxu0
        %v1406 = vadd.f32 %v1309, %v1405
        %v1407 = vpop.f32.mrf.mxu0
        %1408 = vdwg.mxu0
        %1409 = vmatprep.subr.bf16.mxu0 0
        %1410 = vmatpush1.bf16.msra.mxu0 %v1206
        %1411 = vmatprep.subr.bf16.mxu0 0
        %1412 = vmatpush1.bf16.msra.mxu0 %v1205
        %1413 = vmatprep.subr.bf16.mxu0 0
        %1414 = vmatpush1.bf16.msra.mxu0 %v1204
        %1415 = vmatprep.subr.bf16.mxu0 0
        %1416 = vmatpush1.bf16.msra.mxu0 %v1203
        %1417 = vmatprep.subr.bf16.mxu0 0
        %1418 = vmatpush1.bf16.msra.mxu0 %v1202
        %1419 = vmatprep.subr.bf16.mxu0 0
        %1420 = vmatpush1.bf16.msra.mxu0 %v1201
        %1421 = vmatprep.subr.bf16.mxu0 0
        %1422 = vmatpush1.bf16.msra.mxu0 %v1200
        %1423 = vmatprep.subr.bf16.mxu0 0
        %1424 = vmatpush1.bf16.msra.mxu0 %v1199
        %1425 = vmatprep.subr.bf16.mxu0 0
        %1426 = vmatpush2.bf16.msra.mxu0 0
        %1427 = vmatprep.subr.bf16.mxu0 0
        %1428 = vmatpush2.bf16.msra.mxu0 0
        %1429 = vmatprep.subr.bf16.mxu0 0
        %1430 = vmatpush2.bf16.msra.mxu0 0
        %1431 = vmatprep.subr.bf16.mxu0 0
        %1432 = vmatpush2.bf16.msra.mxu0 0
        %1433 = vmatprep.subr.bf16.mxu0 0
        %1434 = vmatpush2.bf16.msra.mxu0 0
        %1435 = vmatprep.subr.bf16.mxu0 0
        %1436 = vmatpush2.bf16.msra.mxu0 0
        %1437 = vmatprep.subr.bf16.mxu0 0
        %1438 = vmatpush2.bf16.msra.mxu0 0
        %1439 = vmatprep.subr.bf16.mxu0 0
        %1440 = vmatpush2.bf16.msra.mxu0 0
        %1441 = vmatprep.mubr.bf16.mxu0 0
        %1442 = vmatmul.mubr.bf16.gmra.mxu0 %v1143
        %v1443 = vpop.f32.mrf.mxu0
        %v1444 = vadd.f32 0.0, %v1443
        %v1445 = vpop.f32.mrf.mxu0
        %v1446 = vpop.f32.mrf.mxu0
        %v1447 = vadd.f32 0.0, %v1446
        %v1448 = vpop.f32.mrf.mxu0
        %1449 = vmatprep.mubr.bf16.mxu0 0
        %1450 = vmatmul.mubr.bf16.gmra.mxu0 %v1144
        %v1451 = vpop.f32.mrf.mxu0
        %v1452 = vadd.f32 0.0, %v1451
        %v1453 = vpop.f32.mrf.mxu0
        %v1454 = vpop.f32.mrf.mxu0
        %v1455 = vadd.f32 0.0, %v1454
        %v1456 = vpop.f32.mrf.mxu0
        %1457 = vmatprep.mubr.bf16.mxu0 0
        %1458 = vmatmul.mubr.bf16.gmra.mxu0 %v1145
        %v1459 = vpop.f32.mrf.mxu0
        %v1460 = vadd.f32 0.0, %v1459
        %v1461 = vpop.f32.mrf.mxu0
        %v1462 = vpop.f32.mrf.mxu0
        %v1463 = vadd.f32 0.0, %v1462
        %v1464 = vpop.f32.mrf.mxu0
        %1465 = vmatprep.mubr.bf16.mxu0 0
        %1466 = vmatmul.mubr.bf16.gmra.mxu0 %v1146
        %v1467 = vpop.f32.mrf.mxu0
        %v1468 = vadd.f32 0.0, %v1467
        %v1469 = vpop.f32.mrf.mxu0
        %v1470 = vpop.f32.mrf.mxu0
        %v1471 = vadd.f32 0.0, %v1470
        %v1472 = vpop.f32.mrf.mxu0
        %1473 = vmatprep.mubr.bf16.mxu0 0
        %1474 = vmatmul.mubr.bf16.gmra.mxu0 %v1147
        %v1475 = vpop.f32.mrf.mxu0
        %v1476 = vadd.f32 0.0, %v1475
        %v1477 = vpop.f32.mrf.mxu0
        %v1478 = vpop.f32.mrf.mxu0
        %v1479 = vadd.f32 0.0, %v1478
        %v1480 = vpop.f32.mrf.mxu0
        %1481 = vmatprep.mubr.bf16.mxu0 0
        %1482 = vmatmul.mubr.bf16.gmra.mxu0 %v1148
        %v1483 = vpop.f32.mrf.mxu0
        %v1484 = vadd.f32 0.0, %v1483
        %v1485 = vpop.f32.mrf.mxu0
        %v1486 = vpop.f32.mrf.mxu0
        %v1487 = vadd.f32 0.0, %v1486
        %v1488 = vpop.f32.mrf.mxu0
        %1489 = vmatprep.mubr.bf16.mxu0 0
        %1490 = vmatmul.mubr.bf16.gmra.mxu0 %v1149
        %v1491 = vpop.f32.mrf.mxu0
        %v1492 = vadd.f32 0.0, %v1491
        %v1493 = vpop.f32.mrf.mxu0
        %v1494 = vpop.f32.mrf.mxu0
        %v1495 = vadd.f32 0.0, %v1494
        %v1496 = vpop.f32.mrf.mxu0
        %1497 = vmatprep.mubr.bf16.mxu0 0
        %1498 = vmatmul.mubr.bf16.gmra.mxu0 %v1150
        %v1499 = vpop.f32.mrf.mxu0
        %v1500 = vadd.f32 0.0, %v1499
        %v1501 = vpop.f32.mrf.mxu0
        %v1502 = vpop.f32.mrf.mxu0
        %v1503 = vadd.f32 0.0, %v1502
        %v1504 = vpop.f32.mrf.mxu0
        %1505 = vdwg.mxu0
        %v1506 = vadd.f32 %v1347, %v1444
        %v1507 = vadd.f32 %v1350, %v1447
        %v1508 = vadd.f32 %v1355, %v1452
        %v1509 = vadd.f32 %v1358, %v1455
        %v1510 = vadd.f32 %v1363, %v1460
        %v1511 = vadd.f32 %v1366, %v1463
        %v1512 = vadd.f32 %v1371, %v1468
        %v1513 = vadd.f32 %v1374, %v1471
        %v1514 = vadd.f32 %v1379, %v1476
        %v1515 = vadd.f32 %v1382, %v1479
        %v1516 = vadd.f32 %v1387, %v1484
        %v1517 = vadd.f32 %v1390, %v1487
        %v1518 = vadd.f32 %v1395, %v1492
        %v1519 = vadd.f32 %v1398, %v1495
        %v1520 = vadd.f32 %v1403, %v1500
        %v1521 = vadd.f32 %v1406, %v1503
        %1522 = vst [vmem:[%s217] sm:$0xff] %v1506
        %1523 = vst [vmem:[%s217 + $0x8] sm:$0xff] %v1507
        %1524 = vst [vmem:[%s217 + $0x10] sm:$0xff] %v1508
        %1525 = vst [vmem:[%s217 + $0x18] sm:$0xff] %v1509
        %1526 = vst [vmem:[%s217 + $0x20] sm:$0xff] %v1510
        %1527 = vst [vmem:[%s217 + $0x28] sm:$0xff] %v1511
        %1528 = vst [vmem:[%s217 + $0x30] sm:$0xff] %v1512
        %1529 = vst [vmem:[%s217 + $0x38] sm:$0xff] %v1513
        %1530 = vst [vmem:[%s217 + $0x40] sm:$0xff] %v1514
        %1531 = vst [vmem:[%s217 + $0x48] sm:$0xff] %v1515
        %1532 = vst [vmem:[%s217 + $0x50] sm:$0xff] %v1516
        %1533 = vst [vmem:[%s217 + $0x58] sm:$0xff] %v1517
        %1534 = vst [vmem:[%s217 + $0x60] sm:$0xff] %v1518
        %1535 = vst [vmem:[%s217 + $0x68] sm:$0xff] %v1519
        %1536 = vst [vmem:[%s217 + $0x70] sm:$0xff] %v1520
        %1537 = vst [vmem:[%s217 + $0x78] sm:$0xff] %v1521
        %s1538 = sand.u32 %s97, 1
        %s1539 = scalar_lea.sflag [#allocation4], %s1538
        %s1540 = sand.u32 %s97, 1
        %s1541 = smul.addr %s1540, 128
        %s1542 = scalar_lea.vmem [#allocation8], %s1541
        // Predicated region
        $region45: #{tpu_custom_call.1} parent=31 // pred_check
          %p1543 = pneg %p107
        $region46: #{tpu_custom_call.1} parent=31 // pred_check_branch
          %1545 = sbr.rel (%p1543) target = $region48
        $region47: #{tpu_custom_call.1} parent=31 // pred_region
          %s1546 = smul.u32 16, %s21
          %s1548 = ssub.s32 2048, 2048
          %1549 = vsyncadd %s1539, %s1548
          %s1550 = smul.addr %s1546, 128
          %s1551 = scalar_lea.hbm %s3, %s1550
          %s1552 = sshll.u32 %s1542, 4
          %s1553 = int_to_ptr.vmem [resolvable:$true] %s1552
          %1558 = dma.vmem_to_hbm [thread:$0]  %s1553, 2048, %s1551, %s1539, 128, 128, 8
        $region48: #{tpu_custom_call.1} parent=31 // pred_fallthru
          _
      $region32: #{tpu_custom_call.1} parent=5 // pred_fallthru
        _
      %p1559 = scmp.le.s32.totalorder 2, %s16
      // Predicated region
      $region49: #{tpu_custom_call.1} parent=5 // pred_check
        %p1560 = pneg %p1559
      $region50: #{tpu_custom_call.1} parent=5 // pred_check_branch
        %1562 = sbr.rel (%p1560) target = $region52
      $region51: #{tpu_custom_call.1} parent=5 // pred_region
        %s1563 = ssub.s32 %s16, 2
        // Predicated region
        $region53: #{tpu_custom_call.1} parent=51 // pred_check
          %p1564 = pneg %p113
        $region54: #{tpu_custom_call.1} parent=51 // pred_check_branch
          %1566 = sbr.rel (%p1564) target = $region56
        $region55: #{tpu_custom_call.1} parent=51 // pred_region
          %s1567 = sand.u32 %s98, 1
          %s1568 = scalar_lea.sflag [#allocation4], %s1567
          %s1569 = sand.u32 %s98, 1
          %s1570 = smul.addr %s1569, 128
          %s1571 = scalar_lea.vmem [#allocation8], %s1570
          %1572 = dma.done %s1568, 2048
        $region56: #{tpu_custom_call.1} parent=51 // pred_fallthru
          _
      $region52: #{tpu_custom_call.1} parent=5 // pred_fallthru
        _
    $region6: #{tpu_custom_call.1} parent=1 // loop_footer
      %s20 = sadd.s32 1, %s16
    $region7: #{tpu_custom_call.1} parent=1 // loop_footer_branch
      %15 = sbr.rel target = $region3
    $region8: #{tpu_custom_call.1} parent=1 // loop_exit
      _
    %1573 = vsyncpa [#allocation3], 1
    %s1574 = scalar_lea.sflag [#allocation3], 1
    %1575 = vsyncpa %s1574, 1
    %1576 = vsyncpa [#allocation6], 1
    %1577 = vsyncpa [#allocation4], 1
    %s1578 = scalar_lea.sflag [#allocation4], 1
    %1579 = vsyncpa %s1578, 1

</llo_original>
